<compile_context>
chip_gen: v7x
topology: tpu7x:2x2x1
jax: 0.10.0
libtpu: 0.0.40
codegen_flags: <defaults>
</compile_context>

<pallas_src>
import functools

import jax
import jax.numpy as jnp
from jax import lax
from jax.experimental import pallas as pl
from jax.experimental.pallas import tpu as pltpu


def _round_up(x, m):
    return ((x + m - 1) // m) * m


def _default_matmul_dtype():
    """bf16 MXU operands on v5e (no native f32 MXU path), f32 elsewhere."""
    try:
        kind = jax.devices()[0].device_kind.lower()
    except Exception:
        return jnp.float32
    if ("v5e" in kind) or ("v5 lite" in kind) or ("v5lite" in kind):
        return jnp.bfloat16
    return jnp.float32


def _netvlad_kernel(x_ref, w_ref, cent_ref, out_ref, acc_ref, asum_ref, *,
                    s_valid, s_block, mask_tail, matmul_dtype):
    # x_ref:    (C, TS)   one batch element, one spatial tile (native NCHW layout)
    # w_ref:    (K, C)    1x1-conv weight (bias=False since vladv2=False)
    # cent_ref: (K, C)    cluster centroids
    # out_ref:  (K, C)    resident across the S axis; written on the last S step
    # acc_ref:  (K, C) f32 scratch   sum_s a[k,s] * x[c,s]
    # asum_ref: (K, 1) f32 scratch   sum_s a[k,s]
    s_idx = pl.program_id(1)
    num_s = pl.num_programs(1)

    @pl.when(s_idx == 0)
    def _init():
        acc_ref[...] = jnp.zeros_like(acc_ref)
        asum_ref[...] = jnp.zeros_like(asum_ref)

    mm = matmul_dtype
    x = x_ref[...]
    w = w_ref[...]

    # Soft-assignment logits: logits[k, s] = sum_c W[k, c] * x[c, s].
    # W is the stationary LHS (no broadcast, no transpose); f32 accumulation.
    logits = jnp.dot(w.astype(mm), x.astype(mm),
                     preferred_element_type=jnp.float32)            # (K, TS)

    # Softmax over clusters (axis 0).  Exact reciprocal keeps the strict 1e-5
    # tolerance; switch to approx=True (EUP slot) only if ~1e-3 is acceptable.
    m = jnp.max(logits, axis=0, keepdims=True)
    e = jnp.exp(logits - m)
    a = e * pl.reciprocal(jnp.sum(e, axis=0, keepdims=True), approx=False)

    if mask_tail:
        # Zero assignments of padded spatial columns so they contribute nothing
        # to a_sum / acc.  (x is zero-padded on the host, so logits there are
        # finite; only the uniform 1/K assignment has to be removed.)
        col = lax.broadcasted_iota(jnp.int32, a.shape, 1)
        valid = (s_idx * s_block + col) < s_valid
        a = jnp.where(valid, a, 0.0)

    # acc[k, c] += sum_s a[k, s] * x[c, s]   (trailing-dim contraction, QK^T-style)
    acc_ref[...] += lax.dot_general(
        a.astype(mm), x.astype(mm),
        dimension_numbers=(((1,), (1,)), ((), ())),
        preferred_element_type=jnp.float32)                          # (K, C)
    asum_ref[...] += jnp.sum(a, axis=1, keepdims=True)               # (K, 1)

    @pl.when(s_idx == num_s - 1)
    def _finalize():
        vlad = acc_ref[...] - cent_ref[...].astype(jnp.float32) * asum_ref[...]
        # Fused intra-cluster + global L2 normalization (F.normalize eps=1e-12).
        row_sq = jnp.sum(vlad * vlad, axis=1, keepdims=True)         # (K, 1)
        inv_row = lax.rsqrt(jnp.maximum(row_sq, 1e-24))
        g_sq = jnp.sum(row_sq * (inv_row * inv_row), axis=0, keepdims=True)
        inv_g = lax.rsqrt(jnp.maximum(g_sq, 1e-24))
        out_ref[...] = (vlad * (inv_row * inv_g)).astype(out_ref.dtype)


def netvlad_forward(x_nchw, conv_w, centroids, *, s_block=None,
                    matmul_dtype=None, input_dtype=None,
                    single_buffer_constants=True):
    """x_nchw: (N, C, H, W); conv_w: (K, C); centroids: (K, C) -> (N, K*C).

    s_block:      spatial tile (multiple of 128).  Default picks the largest
                  tile <= 512 that still leaves >= 2 pipelined S-steps, so
                  input DMA overlaps compute on every chip.
    matmul_dtype: MXU operand dtype.  Default: bf16 on v5e, f32 elsewhere.
    input_dtype:  optionally cast x at the pallas_call boundary (e.g. bf16 on
                  v7x/v6e to halve HBM read traffic); math stays f32.
    """
    N, C, H, W = x_nchw.shape
    K = conv_w.shape[0]
    S = H * W

    if matmul_dtype is None:
        matmul_dtype = _default_matmul_dtype()

    # NCHW -> (N, C, S) is a pure reshape (no transpose, no extra HBM traffic).
    x_ncs = x_nchw.reshape(N, C, S)
    if input_dtype is not None:
        x_ncs = x_ncs.astype(input_dtype)

    # --- spatial tiling: lane-dense (multiple of 128), >= 2 S-steps if possible.
    s_pad128 = _round_up(S, 128)
    n128 = s_pad128 // 128
    if s_block is None:
        best = 1
        for cpb in range(1, min(4, n128) + 1):       # tile <= 512 lanes
            if n128 % cpb == 0 and n128 // cpb >= 2:
                best = cpb
        s_block = best * 128
    else:
        s_block = min(_round_up(int(s_block), 128), s_pad128)
    s_pad = _round_up(S, s_block)
    num_s_steps = s_pad // s_block
    mask_tail = (s_pad != S)
    if mask_tail:
        x_ncs = jnp.pad(x_ncs, ((0, 0), (0, 0), (0, s_pad - S)))

    # --- VMEM budget including the (K, TS) softmax intermediates (v7x: 64 MiB).
    b4 = 4
    est = (2 * C * s_block * b4            # x block, double-buffered
           + 2 * K * C * b4                # output block buffers
           + 2 * 2 * K * C * b4            # conv weight + centroids
           + K * C * b4 + K * 128 * b4     # scratch acc + asum (lane-padded)
           + 4 * K * s_block * b4          # logits / exp / assignment live vals
           + 3 * K * C * b4                # finalize temporaries
           + 2 * C * s_block * b4)         # in-kernel dtype-cast copies of x
    vmem_limit = int(min(64 * 1024 * 1024, max(2 * est, 8 * 1024 * 1024)))

    kernel = functools.partial(
        _netvlad_kernel, s_valid=S, s_block=s_block, mask_tail=mask_tail,
        matmul_dtype=matmul_dtype)

    x_spec = pl.BlockSpec((None, C, s_block), lambda b, s: (b, 0, s))
    out_spec = pl.BlockSpec((None, K, C), lambda b, s: (b, 0, 0))
    out_dtype = x_nchw.dtype

    def run(use_single_buffer):
        const_kwargs = {}
        if use_single_buffer:
            # Grid-invariant operands: one pipeline buffer is enough.
            const_kwargs = dict(pipeline_mode=pl.Buffered(1))
        w_spec = pl.BlockSpec((K, C), lambda b, s: (0, 0), **const_kwargs)
        c_spec = pl.BlockSpec((K, C), lambda b, s: (0, 0), **const_kwargs)
        call = pl.pallas_call(
            kernel,
            out_shape=jax.ShapeDtypeStruct((N, K, C), out_dtype),
            grid_spec=pltpu.PrefetchScalarGridSpec(
                num_scalar_prefetch=0,
                grid=(N, num_s_steps),
                in_specs=[x_spec, w_spec, c_spec],
                out_specs=out_spec,
                scratch_shapes=[pltpu.VMEM((K, C), jnp.float32),
                                pltpu.VMEM((K, 1), jnp.float32)],
            ),
            compiler_params=pltpu.CompilerParams(
                dimension_semantics=("parallel", "arbitrary"),
                vmem_limit_bytes=vmem_limit),
        )
        return call(x_ncs, conv_w, centroids)

    if single_buffer_constants:
        try:
            out = jax.block_until_ready(run(True))
        except Exception:
            # Fall back if this JAX build rejects Buffered(1) for inputs.
            out = run(False)
    else:
        out = run(False)

    return out.reshape(N, K * C)


def netvlad_reference(x_nchw, conv_w, centroids):
    """Pure-JAX reference mirroring the PyTorch forward."""
    N, C, H, W = x_nchw.shape
    x_flat = x_nchw.reshape(N, C, H * W)                              # (N, C, S)
    logits = jnp.einsum("kc,ncs->nks", conv_w, x_flat,
                        precision=lax.Precision.HIGHEST)              # (N, K, S)
    a = jax.nn.softmax(logits, axis=1)
    vlad = jnp.einsum("nks,ncs->nkc", a, x_flat,
                      precision=lax.Precision.HIGHEST) \
        - centroids[None, :, :] * jnp.sum(a, axis=-1)[:, :, None]
    rn = jnp.sqrt(jnp.sum(vlad * vlad, axis=-1, keepdims=True))
    vlad = vlad / jnp.maximum(rn, 1e-12)
    vlad = vlad.reshape(N, -1)
    gn = jnp.sqrt(jnp.sum(vlad * vlad, axis=-1, keepdims=True))
    return vlad / jnp.maximum(gn, 1e-12)


if __name__ == "__main__":
    # Module defaults: num_clusters=64, dim=128 (1x1 conv, bias=False).
    num_clusters, dim = 64, 128
    N, H, W = 2, 16, 16            # S = 256 -> lane-dense, grid (2 batch, 2 S) = 4 steps

    key = jax.random.PRNGKey(0)
    kx, kw, kc = jax.random.split(key, 3)

    x = jax.random.normal(kx, (N, dim, H, W), dtype=jnp.float32)             # NCHW
    conv_w = jax.random.normal(kw, (num_clusters, dim), jnp.float32) * 0.05  # (K, C)
    centroids = jax.random.uniform(kc, (num_clusters, dim), jnp.float32)     # torch.rand
    # TODO(synk): wq/wk/mean/bias/TransformerLayer are defined in __init__ but
    # unused in forward; intentionally omitted.

    mm_dtype = _default_matmul_dtype()
    if mm_dtype == jnp.float32:
        atol = rtol = 1e-5
    else:                           # bf16 MXU path (v5e default)
        atol, rtol = 5e-3, 5e-2

    ref = jax.block_until_ready(netvlad_reference(x, conv_w, centroids))
    out = jax.block_until_ready(netvlad_forward(x, conv_w, centroids))
    assert out.shape == (N, num_clusters * dim)
    assert jnp.allclose(out, ref, atol=atol, rtol=rtol), \
        float(jnp.max(jnp.abs(out - ref)))

    # Ragged spatial size: exercises the pad-to-128 + softmax masking path.
    H2, W2 = 9, 9                  # S = 81 -> padded to 128, masked
    x2 = jax.random.normal(kx, (N, dim, H2, W2), dtype=jnp.float32)
    ref2 = jax.block_until_ready(netvlad_reference(x2, conv_w, centroids))
    out2 = jax.block_until_ready(netvlad_forward(x2, conv_w, centroids))
    assert jnp.allclose(out2, ref2, atol=atol, rtol=rtol), \
        float(jnp.max(jnp.abs(out2 - ref2)))

    # bf16 input at the pallas_call boundary (halves HBM read traffic on v7x/v6e);
    # math stays f32, so only the input quantization error remains.
    out3 = jax.block_until_ready(
        netvlad_forward(x, conv_w, centroids, input_dtype=jnp.bfloat16))
    assert jnp.allclose(out3, ref, atol=1e-2, rtol=1e-1), \
        float(jnp.max(jnp.abs(out3 - ref)))

    print("KERNEL_OK")
</pallas_src>

<mosaic_0001>
module attributes {stable_mosaic.version = 11 : i64} {
  func.func @_netvlad_kernel(%arg0: i32, %arg1: i32, %arg2: memref<1x128x128xf32, #tpu.memory_space<vmem>>, %arg3: memref<64x128xf32, #tpu.memory_space<vmem>>, %arg4: memref<64x128xf32, #tpu.memory_space<vmem>>, %arg5: memref<1x64x128xf32, #tpu.memory_space<vmem>>, %arg6: memref<64x128xf32, #tpu.memory_space<vmem>>, %arg7: memref<64x1xf32, #tpu.memory_space<vmem>>) attributes {dimension_semantics = [#tpu.dimension_semantics<parallel>, #tpu.dimension_semantics<arbitrary>], iteration_bounds = array<i64: 2, 2>, scalar_prefetch = 0 : i64, scratch_operands = 2 : i64, tpu.core_type = #tpu.core_type<tc>, window_params = [{transform_indices = @transform_0, window_bounds = array<i64: 1, 128, 128>}, {pipeline_mode = #tpu.pipeline_mode<synchronous>, transform_indices = @transform_1, window_bounds = array<i64: 64, 128>}, {pipeline_mode = #tpu.pipeline_mode<synchronous>, transform_indices = @transform_2, window_bounds = array<i64: 64, 128>}, {transform_indices = @transform_3, window_bounds = array<i64: 1, 64, 128>}]} {
    %c0_i32 = arith.constant 0 : i32
    %0 = arith.cmpi eq, %arg1, %c0_i32 : i32
    %1 = arith.extui %0 : i1 to i32
    %c0_i32_0 = arith.constant 0 : i32
    %2 = arith.cmpi ne, %1, %c0_i32_0 : i32
    scf.if %2 {
      %cst_18 = arith.constant 0.000000e+00 : f32
      %29 = vector.broadcast %cst_18 : f32 to vector<64x128xf32>
      %c0_19 = arith.constant 0 : index
      %c0_20 = arith.constant 0 : index
      %30 = vector.load %arg6[%c0_19, %c0_20] : memref<64x128xf32, #tpu.memory_space<vmem>>, vector<64x128xf32>
      tpu.vector_store %arg6[%c0_19, %c0_20], %29 {strides = array<i32>} : memref<64x128xf32, #tpu.memory_space<vmem>>, vector<64x128xf32>,
      %cst_21 = arith.constant 0.000000e+00 : f32
      %31 = vector.broadcast %cst_21 : f32 to vector<64x1xf32>
      %c0_22 = arith.constant 0 : index
      %c0_23 = arith.constant 0 : index
      %32 = vector.load %arg7[%c0_22, %c0_23] : memref<64x1xf32, #tpu.memory_space<vmem>>, vector<64x1xf32>
      tpu.vector_store %arg7[%c0_22, %c0_23], %31 {strides = array<i32>} : memref<64x1xf32, #tpu.memory_space<vmem>>, vector<64x1xf32>,
    } else {
    }
    %c0 = arith.constant 0 : index
    %c0_1 = arith.constant 0 : index
    %c0_2 = arith.constant 0 : index
    %3 = vector.load %arg2[%c0, %c0_1, %c0_2] : memref<1x128x128xf32, #tpu.memory_space<vmem>>, vector<1x128x128xf32>
    %4 = vector.shape_cast %3 : vector<1x128x128xf32> to vector<128x128xf32>
    %c0_3 = arith.constant 0 : index
    %c0_4 = arith.constant 0 : index
    %5 = vector.load %arg3[%c0_3, %c0_4] : memref<64x128xf32, #tpu.memory_space<vmem>>, vector<64x128xf32>
    %cst = arith.constant dense<0.000000e+00> : vector<64x128xf32>
    %6 = tpu.matmul %5, %4, %cst {dimension_numbers = #tpu.dot_dimension_numbers<[1], [0], [0], [1], [0, 0, 1, 1], [], []>} : vector<64x128xf32>, vector<128x128xf32>, vector<64x128xf32> -> vector<64x128xf32>
    %cst_5 = arith.constant dense<0xFF800000> : vector<128xf32>
    %7 = vector.multi_reduction <maximumf>, %6, %cst_5 [0] : vector<64x128xf32> to vector<128xf32>
    %8 = vector.shape_cast %7 : vector<128xf32> to vector<1x128xf32>
    %9 = vector.broadcast %8 : vector<1x128xf32> to vector<64x128xf32>
    %10 = arith.subf %6, %9 : vector<64x128xf32>
    %11 = math.exp %10 : vector<64x128xf32>
    %cst_6 = arith.constant dense<0.000000e+00> : vector<128xf32>
    %12 = vector.multi_reduction <add>, %11, %cst_6 [0] : vector<64x128xf32> to vector<128xf32>
    %13 = vector.shape_cast %12 : vector<128xf32> to vector<1x128xf32>
    %14 = tpu.reciprocal %13 : vector<1x128xf32> -> vector<1x128xf32>
    %15 = vector.broadcast %14 : vector<1x128xf32> to vector<64x128xf32>
    %16 = arith.mulf %11, %15 : vector<64x128xf32>
    %c0_7 = arith.constant 0 : index
    %c0_8 = arith.constant 0 : index
    %17 = vector.load %arg6[%c0_7, %c0_8] : memref<64x128xf32, #tpu.memory_space<vmem>>, vector<64x128xf32>
    %cst_9 = arith.constant dense<0.000000e+00> : vector<64x128xf32>
    %18 = tpu.matmul %16, %4, %cst_9 {dimension_numbers = #tpu.dot_dimension_numbers<[1], [1], [0], [0], [0, 0, 1, 0], [], []>} : vector<64x128xf32>, vector<128x128xf32>, vector<64x128xf32> -> vector<64x128xf32>
    %19 = arith.addf %17, %18 : vector<64x128xf32>
    %c0_10 = arith.constant 0 : index
    %c0_11 = arith.constant 0 : index
    %20 = vector.load %arg6[%c0_10, %c0_11] : memref<64x128xf32, #tpu.memory_space<vmem>>, vector<64x128xf32>
    tpu.vector_store %arg6[%c0_10, %c0_11], %19 {strides = array<i32>} : memref<64x128xf32, #tpu.memory_space<vmem>>, vector<64x128xf32>,
    %c0_12 = arith.constant 0 : index
    %c0_13 = arith.constant 0 : index
    %21 = vector.load %arg7[%c0_12, %c0_13] : memref<64x1xf32, #tpu.memory_space<vmem>>, vector<64x1xf32>
    %cst_14 = arith.constant dense<0.000000e+00> : vector<64xf32>
    %22 = vector.multi_reduction <add>, %16, %cst_14 [1] : vector<64x128xf32> to vector<64xf32>
    %23 = vector.shape_cast %22 : vector<64xf32> to vector<64x1xf32>
    %24 = arith.addf %21, %23 : vector<64x1xf32>
    %c0_15 = arith.constant 0 : index
    %c0_16 = arith.constant 0 : index
    %25 = vector.load %arg7[%c0_15, %c0_16] : memref<64x1xf32, #tpu.memory_space<vmem>>, vector<64x1xf32>
    tpu.vector_store %arg7[%c0_15, %c0_16], %24 {strides = array<i32>} : memref<64x1xf32, #tpu.memory_space<vmem>>, vector<64x1xf32>,
    %c1_i32 = arith.constant 1 : i32
    %26 = arith.cmpi eq, %arg1, %c1_i32 : i32
    %27 = arith.extui %26 : i1 to i32
    %c0_i32_17 = arith.constant 0 : i32
    %28 = arith.cmpi ne, %27, %c0_i32_17 : i32
    scf.if %28 {
      %c0_18 = arith.constant 0 : index
      %c0_19 = arith.constant 0 : index
      %29 = vector.load %arg6[%c0_18, %c0_19] : memref<64x128xf32, #tpu.memory_space<vmem>>, vector<64x128xf32>
      %c0_20 = arith.constant 0 : index
      %c0_21 = arith.constant 0 : index
      %30 = vector.load %arg4[%c0_20, %c0_21] : memref<64x128xf32, #tpu.memory_space<vmem>>, vector<64x128xf32>
      %c0_22 = arith.constant 0 : index
      %c0_23 = arith.constant 0 : index
      %31 = vector.load %arg7[%c0_22, %c0_23] : memref<64x1xf32, #tpu.memory_space<vmem>>, vector<64x1xf32>
      %32 = vector.broadcast %31 : vector<64x1xf32> to vector<64x128xf32>
      %33 = arith.mulf %30, %32 : vector<64x128xf32>
      %34 = arith.subf %29, %33 : vector<64x128xf32>
      %35 = arith.mulf %34, %34 : vector<64x128xf32>
      %cst_24 = arith.constant dense<0.000000e+00> : vector<64xf32>
      %36 = vector.multi_reduction <add>, %35, %cst_24 [1] : vector<64x128xf32> to vector<64xf32>
      %37 = vector.shape_cast %36 : vector<64xf32> to vector<64x1xf32>
      %cst_25 = arith.constant 1.000000e-24 : f32
      %38 = vector.broadcast %cst_25 : f32 to vector<64x1xf32>
      %39 = arith.maximumf %37, %38 : vector<64x1xf32>
      %40 = math.rsqrt %39 : vector<64x1xf32>
      %41 = arith.mulf %40, %40 : vector<64x1xf32>
      %42 = arith.mulf %37, %41 : vector<64x1xf32>
      %cst_26 = arith.constant dense<0.000000e+00> : vector<1xf32>
      %43 = vector.multi_reduction <add>, %42, %cst_26 [0] : vector<64x1xf32> to vector<1xf32>
      %44 = vector.shape_cast %43 : vector<1xf32> to vector<1x1xf32>
      %cst_27 = arith.constant 1.000000e-24 : f32
      %45 = vector.broadcast %cst_27 : f32 to vector<1x1xf32>
      %46 = arith.maximumf %44, %45 : vector<1x1xf32>
      %47 = math.rsqrt %46 : vector<1x1xf32>
      %48 = vector.broadcast %47 : vector<1x1xf32> to vector<64x1xf32>
      %49 = arith.mulf %40, %48 : vector<64x1xf32>
      %50 = vector.broadcast %49 : vector<64x1xf32> to vector<64x128xf32>
      %51 = arith.mulf %34, %50 : vector<64x128xf32>
      %c0_28 = arith.constant 0 : index
      %c0_29 = arith.constant 0 : index
      %c0_30 = arith.constant 0 : index
      %52 = vector.load %arg5[%c0_28, %c0_29, %c0_30] : memref<1x64x128xf32, #tpu.memory_space<vmem>>, vector<1x64x128xf32>
      %53 = vector.shape_cast %52 : vector<1x64x128xf32> to vector<64x128xf32>
      %54 = vector.shape_cast %51 : vector<64x128xf32> to vector<1x64x128xf32>
      tpu.vector_store %arg5[%c0_28, %c0_29, %c0_30], %54 {strides = array<i32>} : memref<1x64x128xf32, #tpu.memory_space<vmem>>, vector<1x64x128xf32>,
    } else {
    }
    return
  }
  func.func @transform_0(%arg0: i32, %arg1: i32) -> (i32, i32, i32) {
    %c0_i32 = arith.constant 0 : i32
    %c0_i32_0 = arith.constant 0 : i32
    return %arg0, %c0_i32, %arg1 : i32, i32, i32
  }
  func.func @transform_1(%arg0: i32, %arg1: i32) -> (i32, i32) {
    %c0_i32 = arith.constant 0 : i32
    %c0_i32_0 = arith.constant 0 : i32
    %c0_i32_1 = arith.constant 0 : i32
    return %c0_i32, %c0_i32_0 : i32, i32
  }
  func.func @transform_2(%arg0: i32, %arg1: i32) -> (i32, i32) {
    %c0_i32 = arith.constant 0 : i32
    %c0_i32_0 = arith.constant 0 : i32
    %c0_i32_1 = arith.constant 0 : i32
    return %c0_i32, %c0_i32_0 : i32, i32
  }
  func.func @transform_3(%arg0: i32, %arg1: i32) -> (i32, i32, i32) {
    %c0_i32 = arith.constant 0 : i32
    %c0_i32_0 = arith.constant 0 : i32
    %c0_i32_1 = arith.constant 0 : i32
    return %arg0, %c0_i32, %c0_i32_0 : i32, i32, i32
  }
}

module attributes {stable_mosaic.version = 11 : i64} {
  func.func @_netvlad_kernel(%arg0: i32, %arg1: i32, %arg2: memref<1x128x128xf32, #tpu.memory_space<vmem>>, %arg3: memref<64x128xf32, #tpu.memory_space<vmem>>, %arg4: memref<64x128xf32, #tpu.memory_space<vmem>>, %arg5: memref<1x64x128xf32, #tpu.memory_space<vmem>>, %arg6: memref<64x128xf32, #tpu.memory_space<vmem>>, %arg7: memref<64x1xf32, #tpu.memory_space<vmem>>) attributes {dimension_semantics = [#tpu.dimension_semantics<parallel>, #tpu.dimension_semantics<arbitrary>], iteration_bounds = array<i64: 2, 2>, scalar_prefetch = 0 : i64, scratch_operands = 2 : i64, tpu.core_type = #tpu.core_type<tc>, window_params = [{transform_indices = @transform_0, window_bounds = array<i64: 1, 128, 128>}, {pipeline_mode = #tpu.pipeline_mode<synchronous>, transform_indices = @transform_1, window_bounds = array<i64: 64, 128>}, {pipeline_mode = #tpu.pipeline_mode<synchronous>, transform_indices = @transform_2, window_bounds = array<i64: 64, 128>}, {transform_indices = @transform_3, window_bounds = array<i64: 1, 64, 128>}]} {
    %c0_i32 = arith.constant 0 : i32
    %0 = arith.cmpi eq, %arg1, %c0_i32 : i32
    %1 = arith.extui %0 : i1 to i32
    %c0_i32_0 = arith.constant 0 : i32
    %2 = arith.cmpi ne, %1, %c0_i32_0 : i32
    scf.if %2 {
      %cst_18 = arith.constant 0.000000e+00 : f32
      %29 = vector.broadcast %cst_18 : f32 to vector<64x128xf32>
      %c0_19 = arith.constant 0 : index
      %c0_20 = arith.constant 0 : index
      %30 = vector.load %arg6[%c0_19, %c0_20] : memref<64x128xf32, #tpu.memory_space<vmem>>, vector<64x128xf32>
      tpu.vector_store %arg6[%c0_19, %c0_20], %29 {strides = array<i32>} : memref<64x128xf32, #tpu.memory_space<vmem>>, vector<64x128xf32>,
      %cst_21 = arith.constant 0.000000e+00 : f32
      %31 = vector.broadcast %cst_21 : f32 to vector<64x1xf32>
      %c0_22 = arith.constant 0 : index
      %c0_23 = arith.constant 0 : index
      %32 = vector.load %arg7[%c0_22, %c0_23] : memref<64x1xf32, #tpu.memory_space<vmem>>, vector<64x1xf32>
      tpu.vector_store %arg7[%c0_22, %c0_23], %31 {strides = array<i32>} : memref<64x1xf32, #tpu.memory_space<vmem>>, vector<64x1xf32>,
    } else {
    }
    %c0 = arith.constant 0 : index
    %c0_1 = arith.constant 0 : index
    %c0_2 = arith.constant 0 : index
    %3 = vector.load %arg2[%c0, %c0_1, %c0_2] : memref<1x128x128xf32, #tpu.memory_space<vmem>>, vector<1x128x128xf32>
    %4 = vector.shape_cast %3 : vector<1x128x128xf32> to vector<128x128xf32>
    %c0_3 = arith.constant 0 : index
    %c0_4 = arith.constant 0 : index
    %5 = vector.load %arg3[%c0_3, %c0_4] : memref<64x128xf32, #tpu.memory_space<vmem>>, vector<64x128xf32>
    %cst = arith.constant dense<0.000000e+00> : vector<64x128xf32>
    %6 = tpu.matmul %5, %4, %cst {dimension_numbers = #tpu.dot_dimension_numbers<[1], [0], [0], [1], [0, 0, 1, 1], [], []>} : vector<64x128xf32>, vector<128x128xf32>, vector<64x128xf32> -> vector<64x128xf32>
    %cst_5 = arith.constant dense<0xFF800000> : vector<128xf32>
    %7 = vector.multi_reduction <maximumf>, %6, %cst_5 [0] : vector<64x128xf32> to vector<128xf32>
    %8 = vector.shape_cast %7 : vector<128xf32> to vector<1x128xf32>
    %9 = vector.broadcast %8 : vector<1x128xf32> to vector<64x128xf32>
    %10 = arith.subf %6, %9 : vector<64x128xf32>
    %11 = math.exp %10 : vector<64x128xf32>
    %cst_6 = arith.constant dense<0.000000e+00> : vector<128xf32>
    %12 = vector.multi_reduction <add>, %11, %cst_6 [0] : vector<64x128xf32> to vector<128xf32>
    %13 = vector.shape_cast %12 : vector<128xf32> to vector<1x128xf32>
    %14 = tpu.reciprocal %13 : vector<1x128xf32> -> vector<1x128xf32>
    %15 = vector.broadcast %14 : vector<1x128xf32> to vector<64x128xf32>
    %16 = arith.mulf %11, %15 : vector<64x128xf32>
    %c0_7 = arith.constant 0 : index
    %c0_8 = arith.constant 0 : index
    %17 = vector.load %arg6[%c0_7, %c0_8] : memref<64x128xf32, #tpu.memory_space<vmem>>, vector<64x128xf32>
    %cst_9 = arith.constant dense<0.000000e+00> : vector<64x128xf32>
    %18 = tpu.matmul %16, %4, %cst_9 {dimension_numbers = #tpu.dot_dimension_numbers<[1], [1], [0], [0], [0, 0, 1, 0], [], []>} : vector<64x128xf32>, vector<128x128xf32>, vector<64x128xf32> -> vector<64x128xf32>
    %19 = arith.addf %17, %18 : vector<64x128xf32>
    %c0_10 = arith.constant 0 : index
    %c0_11 = arith.constant 0 : index
    %20 = vector.load %arg6[%c0_10, %c0_11] : memref<64x128xf32, #tpu.memory_space<vmem>>, vector<64x128xf32>
    tpu.vector_store %arg6[%c0_10, %c0_11], %19 {strides = array<i32>} : memref<64x128xf32, #tpu.memory_space<vmem>>, vector<64x128xf32>,
    %c0_12 = arith.constant 0 : index
    %c0_13 = arith.constant 0 : index
    %21 = vector.load %arg7[%c0_12, %c0_13] : memref<64x1xf32, #tpu.memory_space<vmem>>, vector<64x1xf32>
    %cst_14 = arith.constant dense<0.000000e+00> : vector<64xf32>
    %22 = vector.multi_reduction <add>, %16, %cst_14 [1] : vector<64x128xf32> to vector<64xf32>
    %23 = vector.shape_cast %22 : vector<64xf32> to vector<64x1xf32>
    %24 = arith.addf %21, %23 : vector<64x1xf32>
    %c0_15 = arith.constant 0 : index
    %c0_16 = arith.constant 0 : index
    %25 = vector.load %arg7[%c0_15, %c0_16] : memref<64x1xf32, #tpu.memory_space<vmem>>, vector<64x1xf32>
    tpu.vector_store %arg7[%c0_15, %c0_16], %24 {strides = array<i32>} : memref<64x1xf32, #tpu.memory_space<vmem>>, vector<64x1xf32>,
    %c1_i32 = arith.constant 1 : i32
    %26 = arith.cmpi eq, %arg1, %c1_i32 : i32
    %27 = arith.extui %26 : i1 to i32
    %c0_i32_17 = arith.constant 0 : i32
    %28 = arith.cmpi ne, %27, %c0_i32_17 : i32
    scf.if %28 {
      %c0_18 = arith.constant 0 : index
      %c0_19 = arith.constant 0 : index
      %29 = vector.load %arg6[%c0_18, %c0_19] : memref<64x128xf32, #tpu.memory_space<vmem>>, vector<64x128xf32>
      %c0_20 = arith.constant 0 : index
      %c0_21 = arith.constant 0 : index
      %30 = vector.load %arg4[%c0_20, %c0_21] : memref<64x128xf32, #tpu.memory_space<vmem>>, vector<64x128xf32>
      %c0_22 = arith.constant 0 : index
      %c0_23 = arith.constant 0 : index
      %31 = vector.load %arg7[%c0_22, %c0_23] : memref<64x1xf32, #tpu.memory_space<vmem>>, vector<64x1xf32>
      %32 = vector.broadcast %31 : vector<64x1xf32> to vector<64x128xf32>
      %33 = arith.mulf %30, %32 : vector<64x128xf32>
      %34 = arith.subf %29, %33 : vector<64x128xf32>
      %35 = arith.mulf %34, %34 : vector<64x128xf32>
      %cst_24 = arith.constant dense<0.000000e+00> : vector<64xf32>
      %36 = vector.multi_reduction <add>, %35, %cst_24 [1] : vector<64x128xf32> to vector<64xf32>
      %37 = vector.shape_cast %36 : vector<64xf32> to vector<64x1xf32>
      %cst_25 = arith.constant 1.000000e-24 : f32
      %38 = vector.broadcast %cst_25 : f32 to vector<64x1xf32>
      %39 = arith.maximumf %37, %38 : vector<64x1xf32>
      %40 = math.rsqrt %39 : vector<64x1xf32>
      %41 = arith.mulf %40, %40 : vector<64x1xf32>
      %42 = arith.mulf %37, %41 : vector<64x1xf32>
      %cst_26 = arith.constant dense<0.000000e+00> : vector<1xf32>
      %43 = vector.multi_reduction <add>, %42, %cst_26 [0] : vector<64x1xf32> to vector<1xf32>
      %44 = vector.shape_cast %43 : vector<1xf32> to vector<1x1xf32>
      %cst_27 = arith.constant 1.000000e-24 : f32
      %45 = vector.broadcast %cst_27 : f32 to vector<1x1xf32>
      %46 = arith.maximumf %44, %45 : vector<1x1xf32>
      %47 = math.rsqrt %46 : vector<1x1xf32>
      %48 = vector.broadcast %47 : vector<1x1xf32> to vector<64x1xf32>
      %49 = arith.mulf %40, %48 : vector<64x1xf32>
      %50 = vector.broadcast %49 : vector<64x1xf32> to vector<64x128xf32>
      %51 = arith.mulf %34, %50 : vector<64x128xf32>
      %c0_28 = arith.constant 0 : index
      %c0_29 = arith.constant 0 : index
      %c0_30 = arith.constant 0 : index
      %52 = vector.load %arg5[%c0_28, %c0_29, %c0_30] : memref<1x64x128xf32, #tpu.memory_space<vmem>>, vector<1x64x128xf32>
      %53 = vector.shape_cast %52 : vector<1x64x128xf32> to vector<64x128xf32>
      %54 = vector.shape_cast %51 : vector<64x128xf32> to vector<1x64x128xf32>
      tpu.vector_store %arg5[%c0_28, %c0_29, %c0_30], %54 {strides = array<i32>} : memref<1x64x128xf32, #tpu.memory_space<vmem>>, vector<1x64x128xf32>,
    } else {
    }
    return
  }
  func.func @transform_0(%arg0: i32, %arg1: i32) -> (i32, i32, i32) {
    %c0_i32 = arith.constant 0 : i32
    %c0_i32_0 = arith.constant 0 : i32
    return %arg0, %c0_i32, %arg1 : i32, i32, i32
  }
  func.func @transform_1(%arg0: i32, %arg1: i32) -> (i32, i32) {
    %c0_i32 = arith.constant 0 : i32
    %c0_i32_0 = arith.constant 0 : i32
    %c0_i32_1 = arith.constant 0 : i32
    return %c0_i32, %c0_i32_0 : i32, i32
  }
  func.func @transform_2(%arg0: i32, %arg1: i32) -> (i32, i32) {
    %c0_i32 = arith.constant 0 : i32
    %c0_i32_0 = arith.constant 0 : i32
    %c0_i32_1 = arith.constant 0 : i32
    return %c0_i32, %c0_i32_0 : i32, i32
  }
  func.func @transform_3(%arg0: i32, %arg1: i32) -> (i32, i32, i32) {
    %c0_i32 = arith.constant 0 : i32
    %c0_i32_0 = arith.constant 0 : i32
    %c0_i32_1 = arith.constant 0 : i32
    return %arg0, %c0_i32, %c0_i32_0 : i32, i32, i32
  }
}

</mosaic_0001>

<llo_original>
// kernel: tpu_custom_call.1
$region0: #{tpu_custom_call.1}
  #allocation0 [shape = 'u32[]', space=smem, size = 0x4, offset = 0x4, fixed_abs, tag = 'smem constant byte address 0x4 - core index']
  #allocation1 [shape = 'u32[144,128]{1,0:T(1,128)}', space=vmem, size = 0x12000, scoped, tag = 'internal scratch']
  #allocation2 [shape = 'f32[64,128]{1,0:T(8,128)}', space=vmem, size = 0x8000, scoped, tag = 'scratch operand']
  #allocation3 [shape = 'f32[64,1]{1,0:T(8,128)}', space=vmem, size = 0x8000, scoped, tag = 'scratch operand']
  %s0 = inlined_call_operand.hbm [shape: f32[2,128,256], index: 0, kind: input, shape index: {}]
  %s1 = inlined_call_operand.hbm [shape: f32[64,128], index: 1, kind: input, shape index: {}]
  %s2 = inlined_call_operand.hbm [shape: f32[64,128], index: 2, kind: input, shape index: {}]
  %s3 = inlined_call_operand.hbm [shape: f32[2,64,128], index: 3, kind: output, shape index: {}]
  %s4 = sld [smem:[#allocation0]]
  $region65: #{tpu_custom_call.1} parent=0
    _
  %s6 = ssub.s32 1, %s4
  %s7 = scalar_select 0, %s6, %s4
  $region1: #{tpu_custom_call.1} parent=0
    #allocation4 [shape = 'u8[131072]{0}', space=vmem, size = 0x20000, scoped, tag = 'input window, operand 0']
    #allocation5 [shape = 's32[2]{0}', space=sflag, size = 0x8, scoped, tag = 'scoped memory for tpu_custom_call.1']
    #allocation6 [shape = 's32[2]{0}', space=sflag, size = 0x8, scoped, tag = 'scoped memory for tpu_custom_call.1']
    #allocation7 [shape = 'u8[32768]{0}', space=vmem, size = 0x8000, scoped, tag = 'input window, operand 1, single buffered']
    #allocation8 [shape = 's32[1]{0}', space=sflag, size = 0x4, scoped, tag = 'scoped memory for tpu_custom_call.1']
    #allocation9 [shape = 'u8[32768]{0}', space=vmem, size = 0x8000, scoped, tag = 'input window, operand 2, single buffered']
    #allocation10 [shape = 'u8[65536]{0}', space=vmem, size = 0x10000, scoped, tag = 'output window, operand 0']
    %8 = vsyncpa [#allocation5], 0
    %s9 = scalar_lea.sflag [#allocation5], 1
    %10 = vsyncpa %s9, 0
    %11 = vsyncpa [#allocation8], 0
    %12 = vsyncpa [#allocation6], 0
    %s13 = scalar_lea.sflag [#allocation6], 1
    %14 = vsyncpa %s13, 0
    loop: start=0, step=1, limit=6
    $region2: #{tpu_custom_call.1} parent=1 // loop_pre_header
      _
    $region3: #{tpu_custom_call.1} parent=1 // loop_header
      %s16 = sphi 0, %s20
      %p17 = scmp.ge.s32.totalorder %s16, 6
      %s23 = sphi 0, %s35
      %s24 = sphi 0, %s31
      %s25 = sphi 0, %s23
      %s26 = sphi 0, %s24
      %s27 = sphi 0, %s25
      %s28 = sphi 0, %s26
      %s40 = sphi 0, %s42
      %s43 = sphi 0, %s40
      %s44 = sphi 0, %s43
      %s60 = sphi 0, %s44
      %s64 = sphi 0, %s64
      %s66 = sphi 0, %s64
      %s67 = sphi 0, %s66
      %s81 = sphi 0, %s67
      %s85 = sphi 0, %s85
      %s87 = sphi 0, %s85
      %s88 = sphi 0, %s87
      %s102 = sphi 0, %s88
      %s108 = sphi 0, %s110
      %s111 = sphi 0, %s108
      %s112 = sphi 0, %s111
      %s128 = sphi 0, %s112
    $region4: #{tpu_custom_call.1} parent=1 // loop_header_branch
      %19 = sbr.rel (%p17) target = $region8
    $region5: #{tpu_custom_call.1} parent=1 // loop_body
      %s21 = ssub.s32 %s16, 1
      %s22 = ssub.s32 %s16, 2
      %s29 = sadd.s32 1, %s24
      %p30 = scmp.ge.s32.totalorder %s29, 2
      %s31 = scalar_select %p30, 0, %s29
      %s32 = sadd.s32 1, %s23
      %s33 = scalar_select %p30, %s32, %s23
      %p34 = scmp.ge.s32.totalorder %s33, 2
      %s35 = scalar_select %p34, 0, %s33
      %s36 = ssub.s32 %s23, %s35
      %s37 = ssub.s32 %s24, %s31
      %s38 = sor.u32 %s36, %s37
      %p39 = scmp.eq.s32.totalorder %s38, 0
      %s41 = sadd.s32 %s40, 1
      %s42 = scalar_select %p39, %s40, %s41
      %p45 = pneg %p39
      %p46 = scmp.eq.s32.totalorder %s16, 3
      %p47 = por %p45, %p46
      %p48 = scmp.ne.s32.totalorder %s40, %s43
      %p49 = scmp.eq.s32.totalorder %s16, 0
      %p50 = por %p48, %p49
      %p51 = scmp.ne.s32.totalorder %s40, %s43
      %p52 = scmp.eq.s32.totalorder %s21, 3
      %p53 = por %p51, %p52
      %p54 = scmp.ne.s32.totalorder %s43, %s44
      %p55 = scmp.eq.s32.totalorder %s21, 0
      %p56 = por %p54, %p55
      %p57 = scmp.ne.s32.totalorder %s43, %s44
      %p58 = scmp.eq.s32.totalorder %s22, 3
      %p59 = por %p57, %p58
      %p61 = scmp.ne.s32.totalorder %s44, %s60
      %p62 = scmp.eq.s32.totalorder %s22, 0
      %p63 = por %p61, %p62
      %s65 = sadd.s32 %s64, 1
      %p68 = scmp.eq.s32.totalorder %s16, 3
      %p69 = scmp.ne.s32.totalorder %s64, %s66
      %p70 = scmp.eq.s32.totalorder %s16, 0
      %p71 = por %p69, %p70
      %p72 = scmp.ne.s32.totalorder %s64, %s66
      %p73 = scmp.eq.s32.totalorder %s21, 3
      %p74 = por %p72, %p73
      %p75 = scmp.ne.s32.totalorder %s66, %s67
      %p76 = scmp.eq.s32.totalorder %s21, 0
      %p77 = por %p75, %p76
      %p78 = scmp.ne.s32.totalorder %s66, %s67
      %p79 = scmp.eq.s32.totalorder %s22, 3
      %p80 = por %p78, %p79
      %p82 = scmp.ne.s32.totalorder %s67, %s81
      %p83 = scmp.eq.s32.totalorder %s22, 0
      %p84 = por %p82, %p83
      %s86 = sadd.s32 %s85, 1
      %p89 = scmp.eq.s32.totalorder %s16, 3
      %p90 = scmp.ne.s32.totalorder %s85, %s87
      %p91 = scmp.eq.s32.totalorder %s16, 0
      %p92 = por %p90, %p91
      %p93 = scmp.ne.s32.totalorder %s85, %s87
      %p94 = scmp.eq.s32.totalorder %s21, 3
      %p95 = por %p93, %p94
      %p96 = scmp.ne.s32.totalorder %s87, %s88
      %p97 = scmp.eq.s32.totalorder %s21, 0
      %p98 = por %p96, %p97
      %p99 = scmp.ne.s32.totalorder %s87, %s88
      %p100 = scmp.eq.s32.totalorder %s22, 3
      %p101 = por %p99, %p100
      %p103 = scmp.ne.s32.totalorder %s88, %s102
      %p104 = scmp.eq.s32.totalorder %s22, 0
      %p105 = por %p103, %p104
      %s106 = ssub.s32 %s23, %s35
      %p107 = scmp.eq.s32.totalorder %s106, 0
      %s109 = sadd.s32 %s108, 1
      %s110 = scalar_select %p107, %s108, %s109
      %p113 = pneg %p107
      %p114 = scmp.eq.s32.totalorder %s16, 3
      %p115 = por %p113, %p114
      %p116 = scmp.ne.s32.totalorder %s108, %s111
      %p117 = scmp.eq.s32.totalorder %s16, 0
      %p118 = por %p116, %p117
      %p119 = scmp.ne.s32.totalorder %s108, %s111
      %p120 = scmp.eq.s32.totalorder %s21, 3
      %p121 = por %p119, %p120
      %p122 = scmp.ne.s32.totalorder %s111, %s112
      %p123 = scmp.eq.s32.totalorder %s21, 0
      %p124 = por %p122, %p123
      %p125 = scmp.ne.s32.totalorder %s111, %s112
      %p126 = scmp.eq.s32.totalorder %s22, 3
      %p127 = por %p125, %p126
      %p129 = scmp.ne.s32.totalorder %s112, %s128
      %p130 = scmp.eq.s32.totalorder %s22, 0
      %p131 = por %p129, %p130
      %p132 = scmp.le.s32.totalorder 1, %s16
      %p133 = scmp.lt.s32.totalorder %s16, 5
      %p134 = pnand %p132, %p133
      %p135 = pneg %p134
      // Predicated region
      $region9: #{tpu_custom_call.1} parent=5 // pred_check
        _
      $region10: #{tpu_custom_call.1} parent=5 // pred_check_branch
        %137 = sbr.rel (%p134) target = $region12
      $region11: #{tpu_custom_call.1} parent=5 // pred_region
        %s138 = ssub.s32 %s16, 1
        // Predicated region
        $region13: #{tpu_custom_call.1} parent=11 // pred_check
          %p139 = pneg %p77
        $region14: #{tpu_custom_call.1} parent=11 // pred_check_branch
          %141 = sbr.rel (%p139) target = $region16
        $region15: #{tpu_custom_call.1} parent=11 // pred_region
          %s143 = ssub.s32 1024, 1024
          %144 = vsyncadd [#allocation8], %s143
          %s145 = sshll.u32 [#allocation7], 4
          %s146 = int_to_ptr.vmem [resolvable:$true] %s145
          %151 = dma.hbm_to_vmem [thread:$0]  %s1, 1024, %s146, [#allocation8], 128, 128, 8
        $region16: #{tpu_custom_call.1} parent=11 // pred_fallthru
          _
        // Predicated region
        $region17: #{tpu_custom_call.1} parent=11 // pred_check
          %p152 = pneg %p98
        $region18: #{tpu_custom_call.1} parent=11 // pred_check_branch
          %154 = sbr.rel (%p152) target = $region20
        $region19: #{tpu_custom_call.1} parent=11 // pred_region
          %s156 = ssub.s32 1024, 1024
          %157 = vsyncadd [#allocation8], %s156
          %s158 = sshll.u32 [#allocation9], 4
          %s159 = int_to_ptr.vmem [resolvable:$true] %s158
          %164 = dma.hbm_to_vmem [thread:$0]  %s2, 1024, %s159, [#allocation8], 128, 128, 8
        $region20: #{tpu_custom_call.1} parent=11 // pred_fallthru
          _
      $region12: #{tpu_custom_call.1} parent=5 // pred_fallthru
        _
      %p165 = scmp.lt.s32.totalorder %s16, 4
      // Predicated region
      $region21: #{tpu_custom_call.1} parent=5 // pred_check
        %p166 = pneg %p165
      $region22: #{tpu_custom_call.1} parent=5 // pred_check_branch
        %168 = sbr.rel (%p166) target = $region24
      $region23: #{tpu_custom_call.1} parent=5 // pred_region
        // Predicated region
        $region25: #{tpu_custom_call.1} parent=23 // pred_check
          %p169 = pneg %p50
        $region26: #{tpu_custom_call.1} parent=23 // pred_check_branch
          %171 = sbr.rel (%p169) target = $region28
        $region27: #{tpu_custom_call.1} parent=23 // pred_region
          %s172 = sand.u32 %s40, 1
          %s173 = scalar_lea.sflag [#allocation5], %s172
          %s174 = sand.u32 %s40, 1
          %s175 = smul.addr %s174, 128
          %s176 = scalar_lea.vmem [#allocation4], %s175
          %s178 = ssub.s32 2048, 2048
          %179 = vsyncadd %s173, %s178
          %s180 = smul.addr %s23, 32
          %s181 = sadd.s32 %s24, %s180
          %s182 = smul.addr %s181, 128
          %s183 = scalar_lea.hbm %s0, %s182
          %s184 = sshll.u32 %s176, 4
          %s185 = int_to_ptr.vmem [resolvable:$true] %s184
          %190 = dma.hbm_to_vmem [thread:$0]  %s183, 2048, %s185, %s173, 256, 128, 8
        $region28: #{tpu_custom_call.1} parent=23 // pred_fallthru
          _
      $region24: #{tpu_custom_call.1} parent=5 // pred_fallthru
        _
      %p191 = scmp.le.s32.totalorder 1, %s16
      %p192 = scmp.lt.s32.totalorder %s16, 5
      %p193 = pnand %p191, %p192
      %p194 = pneg %p193
      // Predicated region
      $region29: #{tpu_custom_call.1} parent=5 // pred_check
        _
      $region30: #{tpu_custom_call.1} parent=5 // pred_check_branch
        %196 = sbr.rel (%p193) target = $region32
      $region31: #{tpu_custom_call.1} parent=5 // pred_region
        %s197 = ssub.s32 %s16, 1
        %s198 = sand.u32 %s43, 1
        %s199 = scalar_lea.sflag [#allocation5], %s198
        %s200 = sand.u32 %s43, 1
        %s201 = smul.addr %s200, 128
        %s202 = scalar_lea.vmem [#allocation4], %s201
        // Predicated region
        $region33: #{tpu_custom_call.1} parent=31 // pred_check
          %p203 = pneg %p56
        $region34: #{tpu_custom_call.1} parent=31 // pred_check_branch
          %205 = sbr.rel (%p203) target = $region36
        $region35: #{tpu_custom_call.1} parent=31 // pred_region
          %206 = dma.done %s199, 2048
        $region36: #{tpu_custom_call.1} parent=31 // pred_fallthru
          _
        // Predicated region
        $region37: #{tpu_custom_call.1} parent=31 // pred_check
          %p207 = pneg %p77
        $region38: #{tpu_custom_call.1} parent=31 // pred_check_branch
          %209 = sbr.rel (%p207) target = $region40
        $region39: #{tpu_custom_call.1} parent=31 // pred_region
          %210 = dma.done [#allocation8], 1024
        $region40: #{tpu_custom_call.1} parent=31 // pred_fallthru
          _
        // Predicated region
        $region41: #{tpu_custom_call.1} parent=31 // pred_check
          %p211 = pneg %p98
        $region42: #{tpu_custom_call.1} parent=31 // pred_check_branch
          %213 = sbr.rel (%p211) target = $region44
        $region43: #{tpu_custom_call.1} parent=31 // pred_region
          %214 = dma.done [#allocation8], 1024
        $region44: #{tpu_custom_call.1} parent=31 // pred_fallthru
          _
        %s215 = sand.u32 %s43, 1
        %s216 = scalar_lea.sflag [#allocation5], %s215
        %s217 = sand.u32 %s43, 1
        %s218 = smul.addr %s217, 128
        %s219 = scalar_lea.vmem [#allocation4], %s218
        %p220 = pneg %p56
        %p221 = pneg %p53
        %p222 = pneg %p77
        %p223 = pneg %p74
        %p224 = pneg %p98
        %p225 = pneg %p95
        %p226 = pneg %p124
        %p227 = pneg %p121
        %s228 = sand.u32 %s111, 1
        %s229 = scalar_lea.sflag [#allocation6], %s228
        %s230 = sand.u32 %s111, 1
        %s231 = smul.addr %s230, 64
        %s232 = scalar_lea.vmem [#allocation10], %s231
        %p233 = scmp.eq.s32.totalorder %s26, 0
        // Predicated region
        $region45: #{tpu_custom_call.1} parent=31 // pred_check
          %p234 = pneg %p233
        $region46: #{tpu_custom_call.1} parent=31 // pred_check_branch
          %236 = sbr.rel (%p234) target = $region48
        $region47: #{tpu_custom_call.1} parent=31 // pred_region
          %237 = vst [vmem:[#allocation2] sm:$0xff] 0.0
          %238 = vst [vmem:[#allocation2 + $0x8] sm:$0xff] 0.0
          %239 = vst [vmem:[#allocation2 + $0x10] sm:$0xff] 0.0
          %240 = vst [vmem:[#allocation2 + $0x18] sm:$0xff] 0.0
          %241 = vst [vmem:[#allocation2 + $0x20] sm:$0xff] 0.0
          %242 = vst [vmem:[#allocation2 + $0x28] sm:$0xff] 0.0
          %243 = vst [vmem:[#allocation2 + $0x30] sm:$0xff] 0.0
          %244 = vst [vmem:[#allocation2 + $0x38] sm:$0xff] 0.0
          %vm245 = vcmask 7168
          %246 = vst.msk [vmem:[#allocation3] sm:$0xff] %vm245, 0.0
          %247 = vst.msk [vmem:[#allocation3 + $0x8] sm:$0xff] %vm245, 0.0
          %248 = vst.msk [vmem:[#allocation3 + $0x10] sm:$0xff] %vm245, 0.0
          %249 = vst.msk [vmem:[#allocation3 + $0x18] sm:$0xff] %vm245, 0.0
          %250 = vst.msk [vmem:[#allocation3 + $0x20] sm:$0xff] %vm245, 0.0
          %251 = vst.msk [vmem:[#allocation3 + $0x28] sm:$0xff] %vm245, 0.0
          %252 = vst.msk [vmem:[#allocation3 + $0x30] sm:$0xff] %vm245, 0.0
          %253 = vst.msk [vmem:[#allocation3 + $0x38] sm:$0xff] %vm245, 0.0
        $region48: #{tpu_custom_call.1} parent=31 // pred_fallthru
          _
        %v254 = vld [vmem:[%s202] sm:$0xff]
        %v255 = vld [vmem:[%s202 + $0x8] sm:$0xff]
        %v256 = vld [vmem:[%s202 + $0x10] sm:$0xff]
        %v257 = vld [vmem:[%s202 + $0x18] sm:$0xff]
        %v258 = vld [vmem:[%s202 + $0x20] sm:$0xff]
        %v259 = vld [vmem:[%s202 + $0x28] sm:$0xff]
        %v260 = vld [vmem:[%s202 + $0x30] sm:$0xff]
        %v261 = vld [vmem:[%s202 + $0x38] sm:$0xff]
        %v262 = vld [vmem:[%s202 + $0x40] sm:$0xff]
        %v263 = vld [vmem:[%s202 + $0x48] sm:$0xff]
        %v264 = vld [vmem:[%s202 + $0x50] sm:$0xff]
        %v265 = vld [vmem:[%s202 + $0x58] sm:$0xff]
        %v266 = vld [vmem:[%s202 + $0x60] sm:$0xff]
        %v267 = vld [vmem:[%s202 + $0x68] sm:$0xff]
        %v268 = vld [vmem:[%s202 + $0x70] sm:$0xff]
        %v269 = vld [vmem:[%s202 + $0x78] sm:$0xff]
        %v270 = vld [vmem:[#allocation7] sm:$0xff]
        %v271 = vld [vmem:[#allocation7 + $0x8] sm:$0xff]
        %v272 = vld [vmem:[#allocation7 + $0x10] sm:$0xff]
        %v273 = vld [vmem:[#allocation7 + $0x18] sm:$0xff]
        %v274 = vld [vmem:[#allocation7 + $0x20] sm:$0xff]
        %v275 = vld [vmem:[#allocation7 + $0x28] sm:$0xff]
        %v276 = vld [vmem:[#allocation7 + $0x30] sm:$0xff]
        %v277 = vld [vmem:[#allocation7 + $0x38] sm:$0xff]
        %278 = vmatprep.subr.mxu0 0.0
        %279 = vmatpush1.msra.mxu0 %v254
        %280 = vmatprep.subr.mxu0 0.0
        %281 = vmatpush1.msra.mxu0 %v255
        %282 = vmatprep.subr.mxu0 0.0
        %283 = vmatpush1.msra.mxu0 %v256
        %284 = vmatprep.subr.mxu0 0.0
        %285 = vmatpush1.msra.mxu0 %v257
        %286 = vmatprep.subr.mxu0 0.0
        %287 = vmatpush1.msra.mxu0 %v258
        %288 = vmatprep.subr.mxu0 0.0
        %289 = vmatpush1.msra.mxu0 %v259
        %290 = vmatprep.subr.mxu0 0.0
        %291 = vmatpush1.msra.mxu0 %v260
        %292 = vmatprep.subr.mxu0 0.0
        %293 = vmatpush1.msra.mxu0 %v261
        %294 = vmatprep.subr.mxu0 0.0
        %295 = vmatpush1.msra.mxu0 %v262
        %296 = vmatprep.subr.mxu0 0.0
        %297 = vmatpush1.msra.mxu0 %v263
        %298 = vmatprep.subr.mxu0 0.0
        %299 = vmatpush1.msra.mxu0 %v264
        %300 = vmatprep.subr.mxu0 0.0
        %301 = vmatpush1.msra.mxu0 %v265
        %302 = vmatprep.subr.mxu0 0.0
        %303 = vmatpush1.msra.mxu0 %v266
        %304 = vmatprep.subr.mxu0 0.0
        %305 = vmatpush1.msra.mxu0 %v267
        %306 = vmatprep.subr.mxu0 0.0
        %307 = vmatpush1.msra.mxu0 %v268
        %308 = vmatprep.subr.mxu0 0.0
        %309 = vmatpush1.msra.mxu0 %v269
        %310 = vmatprep.subr.mxu0 0.0
        %311 = vmatpush1.msra.mxu0 0.0
        %312 = vmatprep.subr.mxu0 0.0
        %313 = vmatpush1.msra.mxu0 0.0
        %314 = vmatprep.subr.mxu0 0.0
        %315 = vmatpush1.msra.mxu0 0.0
        %316 = vmatprep.subr.mxu0 0.0
        %317 = vmatpush1.msra.mxu0 0.0
        %318 = vmatprep.subr.mxu0 0.0
        %319 = vmatpush1.msra.mxu0 0.0
        %320 = vmatprep.subr.mxu0 0.0
        %321 = vmatpush1.msra.mxu0 0.0
        %322 = vmatprep.subr.mxu0 0.0
        %323 = vmatpush1.msra.mxu0 0.0
        %324 = vmatprep.subr.mxu0 0.0
        %325 = vmatpush1.msra.mxu0 0.0
        %326 = vmatprep.subr.mxu0 0.0
        %327 = vmatpush1.msra.mxu0 0.0
        %328 = vmatprep.subr.mxu0 0.0
        %329 = vmatpush1.msra.mxu0 0.0
        %330 = vmatprep.subr.mxu0 0.0
        %331 = vmatpush1.msra.mxu0 0.0
        %332 = vmatprep.subr.mxu0 0.0
        %333 = vmatpush1.msra.mxu0 0.0
        %334 = vmatprep.subr.mxu0 0.0
        %335 = vmatpush1.msra.mxu0 0.0
        %336 = vmatprep.subr.mxu0 0.0
        %337 = vmatpush1.msra.mxu0 0.0
        %338 = vmatprep.subr.mxu0 0.0
        %339 = vmatpush1.msra.mxu0 0.0
        %340 = vmatprep.subr.mxu0 0.0
        %341 = vmatpush1.msra.mxu0 0.0
        %342 = vmatprep.mubr.f32.mxu0 0.0
        %343 = vmatmul.mubr.f32.gmra.mrb[0].mxu0 %v270
        %v344 = vpop.f32.mrb[0].mxu0
        %v345 = vadd.f32 0.0, %v344
        %v346 = vpop.f32.mrb[0].mxu0
        %347 = vmatprep.mubr.f32.mxu0 0.0
        %348 = vmatmul.mubr.f32.gmra.mrb[0].mxu0 %v271
        %v349 = vpop.f32.mrb[0].mxu0
        %v350 = vadd.f32 0.0, %v349
        %v351 = vpop.f32.mrb[0].mxu0
        %352 = vmatprep.mubr.f32.mxu0 0.0
        %353 = vmatmul.mubr.f32.gmra.mrb[0].mxu0 %v272
        %v354 = vpop.f32.mrb[0].mxu0
        %v355 = vadd.f32 0.0, %v354
        %v356 = vpop.f32.mrb[0].mxu0
        %357 = vmatprep.mubr.f32.mxu0 0.0
        %358 = vmatmul.mubr.f32.gmra.mrb[0].mxu0 %v273
        %v359 = vpop.f32.mrb[0].mxu0
        %v360 = vadd.f32 0.0, %v359
        %v361 = vpop.f32.mrb[0].mxu0
        %362 = vmatprep.mubr.f32.mxu0 0.0
        %363 = vmatmul.mubr.f32.gmra.mrb[0].mxu0 %v274
        %v364 = vpop.f32.mrb[0].mxu0
        %v365 = vadd.f32 0.0, %v364
        %v366 = vpop.f32.mrb[0].mxu0
        %367 = vmatprep.mubr.f32.mxu0 0.0
        %368 = vmatmul.mubr.f32.gmra.mrb[0].mxu0 %v275
        %v369 = vpop.f32.mrb[0].mxu0
        %v370 = vadd.f32 0.0, %v369
        %v371 = vpop.f32.mrb[0].mxu0
        %372 = vmatprep.mubr.f32.mxu0 0.0
        %373 = vmatmul.mubr.f32.gmra.mrb[0].mxu0 %v276
        %v374 = vpop.f32.mrb[0].mxu0
        %v375 = vadd.f32 0.0, %v374
        %v376 = vpop.f32.mrb[0].mxu0
        %377 = vmatprep.mubr.f32.mxu0 0.0
        %378 = vmatmul.mubr.f32.gmra.mrb[0].mxu0 %v277
        %v379 = vpop.f32.mrb[0].mxu0
        %v380 = vadd.f32 0.0, %v379
        %v381 = vpop.f32.mrb[0].mxu0
        %382 = vdwg.mxu0
        %v383 = vmax.f32 %v345, %v365
        %v384 = vmax.f32 %v350, %v370
        %v385 = vmax.f32 %v355, %v375
        %v386 = vmax.f32 %v360, %v380
        %v387 = vmax.f32 %v383, %v384
        %v388 = vmax.f32 %v385, %v386
        %v389 = vmax.f32 %v387, %v388
        %v390 = vrot.slane %v389, 4
        %v391 = vmax.f32 %v389, %v390
        %v392 = vrot.slane %v391, 2
        %v393 = vmax.f32 %v391, %v392
        %v394 = vrot.slane %v393, 1
        %v395 = vmax.f32 %v393, %v394
        %v396 = vsub.f32 %v345, %v395
        %v397 = vsub.f32 %v350, %v395
        %v398 = vsub.f32 %v355, %v395
        %v399 = vsub.f32 %v360, %v395
        %v400 = vsub.f32 %v365, %v395
        %v401 = vsub.f32 %v370, %v395
        %v402 = vsub.f32 %v375, %v395
        %v403 = vsub.f32 %v380, %v395
        %v404 = vmul.f32 %v396, 1.442695
        %v405 = vpow.pop %v404
        %v406 = vmul.f32 %v397, 1.442695
        %v407 = vpow.pop %v406
        %v408 = vmul.f32 %v398, 1.442695
        %v409 = vpow.pop %v408
        %v410 = vmul.f32 %v399, 1.442695
        %v411 = vpow.pop %v410
        %v412 = vmul.f32 %v400, 1.442695
        %v413 = vpow.pop %v412
        %v414 = vmul.f32 %v401, 1.442695
        %v415 = vpow.pop %v414
        %v416 = vmul.f32 %v402, 1.442695
        %v417 = vpow.pop %v416
        %v418 = vmul.f32 %v403, 1.442695
        %v419 = vpow.pop %v418
        %v420 = vadd.f32 %v405, %v407
        %v421 = vadd.f32 %v420, %v409
        %v422 = vadd.f32 %v421, %v411
        %v423 = vadd.f32 %v422, %v413
        %v424 = vadd.f32 %v423, %v415
        %v425 = vadd.f32 %v424, %v417
        %v426 = vadd.f32 %v425, %v419
        %v427 = vrot.slane %v426, 4
        %v428 = vadd.f32 %v426, %v427
        %v429 = vrot.slane %v428, 2
        %v430 = vadd.f32 %v428, %v429
        %v431 = vrot.slane %v430, 1
        %v432 = vadd.f32 %v430, %v431
        %v433 = vrcp.pop %v432
        %v434 = vmul.f32 %v405, %v433
        %v435 = vmul.f32 %v407, %v433
        %v436 = vmul.f32 %v409, %v433
        %v437 = vmul.f32 %v411, %v433
        %v438 = vmul.f32 %v413, %v433
        %v439 = vmul.f32 %v415, %v433
        %v440 = vmul.f32 %v417, %v433
        %v441 = vmul.f32 %v419, %v433
        %v442 = vld [vmem:[#allocation2] sm:$0xff]
        %v443 = vld [vmem:[#allocation2 + $0x8] sm:$0xff]
        %v444 = vld [vmem:[#allocation2 + $0x10] sm:$0xff]
        %v445 = vld [vmem:[#allocation2 + $0x18] sm:$0xff]
        %v446 = vld [vmem:[#allocation2 + $0x20] sm:$0xff]
        %v447 = vld [vmem:[#allocation2 + $0x28] sm:$0xff]
        %v448 = vld [vmem:[#allocation2 + $0x30] sm:$0xff]
        %v449 = vld [vmem:[#allocation2 + $0x38] sm:$0xff]
        %450 = vmatprep.subr.mxu0 0.0
        %451 = vmatpush1.xpose.msra.mxu0 %v254
        %452 = vmatprep.subr.mxu0 0.0
        %453 = vmatpush1.xpose.msra.mxu0 %v255
        %454 = vmatprep.subr.mxu0 0.0
        %455 = vmatpush1.xpose.msra.mxu0 %v256
        %456 = vmatprep.subr.mxu0 0.0
        %457 = vmatpush1.xpose.msra.mxu0 %v257
        %458 = vmatprep.subr.mxu0 0.0
        %459 = vmatpush1.xpose.msra.mxu0 %v258
        %460 = vmatprep.subr.mxu0 0.0
        %461 = vmatpush1.xpose.msra.mxu0 %v259
        %462 = vmatprep.subr.mxu0 0.0
        %463 = vmatpush1.xpose.msra.mxu0 %v260
        %464 = vmatprep.subr.mxu0 0.0
        %465 = vmatpush1.xpose.msra.mxu0 %v261
        %466 = vmatprep.subr.mxu0 0.0
        %467 = vmatpush1.xpose.msra.mxu0 %v262
        %468 = vmatprep.subr.mxu0 0.0
        %469 = vmatpush1.xpose.msra.mxu0 %v263
        %470 = vmatprep.subr.mxu0 0.0
        %471 = vmatpush1.xpose.msra.mxu0 %v264
        %472 = vmatprep.subr.mxu0 0.0
        %473 = vmatpush1.xpose.msra.mxu0 %v265
        %474 = vmatprep.subr.mxu0 0.0
        %475 = vmatpush1.xpose.msra.mxu0 %v266
        %476 = vmatprep.subr.mxu0 0.0
        %477 = vmatpush1.xpose.msra.mxu0 %v267
        %478 = vmatprep.subr.mxu0 0.0
        %479 = vmatpush1.xpose.msra.mxu0 %v268
        %480 = vmatprep.subr.mxu0 0.0
        %481 = vmatpush1.xpose.msra.mxu0 %v269
        %482 = vmatprep.subr.mxu0 0.0
        %483 = vmatpush1.xpose.msra.mxu0 0.0
        %484 = vmatprep.subr.mxu0 0.0
        %485 = vmatpush1.xpose.msra.mxu0 0.0
        %486 = vmatprep.subr.mxu0 0.0
        %487 = vmatpush1.xpose.msra.mxu0 0.0
        %488 = vmatprep.subr.mxu0 0.0
        %489 = vmatpush1.xpose.msra.mxu0 0.0
        %490 = vmatprep.subr.mxu0 0.0
        %491 = vmatpush1.xpose.msra.mxu0 0.0
        %492 = vmatprep.subr.mxu0 0.0
        %493 = vmatpush1.xpose.msra.mxu0 0.0
        %494 = vmatprep.subr.mxu0 0.0
        %495 = vmatpush1.xpose.msra.mxu0 0.0
        %496 = vmatprep.subr.mxu0 0.0
        %497 = vmatpush1.xpose.msra.mxu0 0.0
        %498 = vmatprep.subr.mxu0 0.0
        %499 = vmatpush1.xpose.msra.mxu0 0.0
        %500 = vmatprep.subr.mxu0 0.0
        %501 = vmatpush1.xpose.msra.mxu0 0.0
        %502 = vmatprep.subr.mxu0 0.0
        %503 = vmatpush1.xpose.msra.mxu0 0.0
        %504 = vmatprep.subr.mxu0 0.0
        %505 = vmatpush1.xpose.msra.mxu0 0.0
        %506 = vmatprep.subr.mxu0 0.0
        %507 = vmatpush1.xpose.msra.mxu0 0.0
        %508 = vmatprep.subr.mxu0 0.0
        %509 = vmatpush1.xpose.msra.mxu0 0.0
        %510 = vmatprep.subr.mxu0 0.0
        %511 = vmatpush1.xpose.msra.mxu0 0.0
        %512 = vmatprep.subr.mxu0 0.0
        %513 = vmatpush1.xpose.msra.mxu0 0.0
        %514 = vmatprep.mubr.f32.mxu0 0.0
        %515 = vmatmul.mubr.f32.gmra.mrb[0].mxu0 %v434
        %v516 = vpop.f32.mrb[0].mxu0
        %v517 = vadd.f32 0.0, %v516
        %v518 = vpop.f32.mrb[0].mxu0
        %519 = vmatprep.mubr.f32.mxu0 0.0
        %520 = vmatmul.mubr.f32.gmra.mrb[0].mxu0 %v435
        %v521 = vpop.f32.mrb[0].mxu0
        %v522 = vadd.f32 0.0, %v521
        %v523 = vpop.f32.mrb[0].mxu0
        %524 = vmatprep.mubr.f32.mxu0 0.0
        %525 = vmatmul.mubr.f32.gmra.mrb[0].mxu0 %v436
        %v526 = vpop.f32.mrb[0].mxu0
        %v527 = vadd.f32 0.0, %v526
        %v528 = vpop.f32.mrb[0].mxu0
        %529 = vmatprep.mubr.f32.mxu0 0.0
        %530 = vmatmul.mubr.f32.gmra.mrb[0].mxu0 %v437
        %v531 = vpop.f32.mrb[0].mxu0
        %v532 = vadd.f32 0.0, %v531
        %v533 = vpop.f32.mrb[0].mxu0
        %534 = vmatprep.mubr.f32.mxu0 0.0
        %535 = vmatmul.mubr.f32.gmra.mrb[0].mxu0 %v438
        %v536 = vpop.f32.mrb[0].mxu0
        %v537 = vadd.f32 0.0, %v536
        %v538 = vpop.f32.mrb[0].mxu0
        %539 = vmatprep.mubr.f32.mxu0 0.0
        %540 = vmatmul.mubr.f32.gmra.mrb[0].mxu0 %v439
        %v541 = vpop.f32.mrb[0].mxu0
        %v542 = vadd.f32 0.0, %v541
        %v543 = vpop.f32.mrb[0].mxu0
        %544 = vmatprep.mubr.f32.mxu0 0.0
        %545 = vmatmul.mubr.f32.gmra.mrb[0].mxu0 %v440
        %v546 = vpop.f32.mrb[0].mxu0
        %v547 = vadd.f32 0.0, %v546
        %v548 = vpop.f32.mrb[0].mxu0
        %549 = vmatprep.mubr.f32.mxu0 0.0
        %550 = vmatmul.mubr.f32.gmra.mrb[0].mxu0 %v441
        %v551 = vpop.f32.mrb[0].mxu0
        %v552 = vadd.f32 0.0, %v551
        %v553 = vpop.f32.mrb[0].mxu0
        %554 = vdwg.mxu0
        %v555 = vadd.f32 %v442, %v517
        %v556 = vadd.f32 %v443, %v522
        %v557 = vadd.f32 %v444, %v527
        %v558 = vadd.f32 %v445, %v532
        %v559 = vadd.f32 %v446, %v537
        %v560 = vadd.f32 %v447, %v542
        %v561 = vadd.f32 %v448, %v547
        %v562 = vadd.f32 %v449, %v552
        %563 = vst [vmem:[#allocation2] sm:$0xff] %v555
        %564 = vst [vmem:[#allocation2 + $0x8] sm:$0xff] %v556
        %565 = vst [vmem:[#allocation2 + $0x10] sm:$0xff] %v557
        %566 = vst [vmem:[#allocation2 + $0x18] sm:$0xff] %v558
        %567 = vst [vmem:[#allocation2 + $0x20] sm:$0xff] %v559
        %568 = vst [vmem:[#allocation2 + $0x28] sm:$0xff] %v560
        %569 = vst [vmem:[#allocation2 + $0x30] sm:$0xff] %v561
        %570 = vst [vmem:[#allocation2 + $0x38] sm:$0xff] %v562
        %v571 = vld [vmem:[#allocation3] sm:$0xff]
        %v572 = vld [vmem:[#allocation3 + $0x8] sm:$0xff]
        %v573 = vld [vmem:[#allocation3 + $0x10] sm:$0xff]
        %v574 = vld [vmem:[#allocation3 + $0x18] sm:$0xff]
        %v575 = vld [vmem:[#allocation3 + $0x20] sm:$0xff]
        %v576 = vld [vmem:[#allocation3 + $0x28] sm:$0xff]
        %v577 = vld [vmem:[#allocation3 + $0x30] sm:$0xff]
        %v578 = vld [vmem:[#allocation3 + $0x38] sm:$0xff]
        %579 = vadd.xlane.f32.xlu0 %v434
        %v580 = vpop.xlane.xlu0 %579
        %581 = vadd.xlane.f32.xlu0 %v435
        %v582 = vpop.xlane.xlu0 %581
        %583 = vadd.xlane.f32.xlu0 %v436
        %v584 = vpop.xlane.xlu0 %583
        %585 = vadd.xlane.f32.xlu0 %v437
        %v586 = vpop.xlane.xlu0 %585
        %587 = vadd.xlane.f32.xlu0 %v438
        %v588 = vpop.xlane.xlu0 %587
        %589 = vadd.xlane.f32.xlu0 %v439
        %v590 = vpop.xlane.xlu0 %589
        %591 = vadd.xlane.f32.xlu0 %v440
        %v592 = vpop.xlane.xlu0 %591
        %593 = vadd.xlane.f32.xlu0 %v441
        %v594 = vpop.xlane.xlu0 %593
        %v595 = vadd.f32 %v571, %v580
        %v596 = vadd.f32 %v572, %v582
        %v597 = vadd.f32 %v573, %v584
        %v598 = vadd.f32 %v574, %v586
        %v599 = vadd.f32 %v575, %v588
        %v600 = vadd.f32 %v576, %v590
        %v601 = vadd.f32 %v577, %v592
        %v602 = vadd.f32 %v578, %v594
        %vm603 = vcmask 7168
        %604 = vst.msk [vmem:[#allocation3] sm:$0xff] %vm603, %v595
        %605 = vst.msk [vmem:[#allocation3 + $0x8] sm:$0xff] %vm603, %v596
        %606 = vst.msk [vmem:[#allocation3 + $0x10] sm:$0xff] %vm603, %v597
        %607 = vst.msk [vmem:[#allocation3 + $0x18] sm:$0xff] %vm603, %v598
        %608 = vst.msk [vmem:[#allocation3 + $0x20] sm:$0xff] %vm603, %v599
        %609 = vst.msk [vmem:[#allocation3 + $0x28] sm:$0xff] %vm603, %v600
        %610 = vst.msk [vmem:[#allocation3 + $0x30] sm:$0xff] %vm603, %v601
        %611 = vst.msk [vmem:[#allocation3 + $0x38] sm:$0xff] %vm603, %v602
        %p612 = scmp.eq.s32.totalorder %s26, 1
        // Predicated region
        $region49: #{tpu_custom_call.1} parent=31 // pred_check
          %p613 = pneg %p612
        $region50: #{tpu_custom_call.1} parent=31 // pred_check_branch
          %615 = sbr.rel (%p613) target = $region52
        $region51: #{tpu_custom_call.1} parent=31 // pred_region
          %v616 = vld [vmem:[#allocation2] sm:$0xff]
          %v617 = vld [vmem:[#allocation2 + $0x8] sm:$0xff]
          %v618 = vld [vmem:[#allocation2 + $0x10] sm:$0xff]
          %v619 = vld [vmem:[#allocation2 + $0x18] sm:$0xff]
          %v620 = vld [vmem:[#allocation2 + $0x20] sm:$0xff]
          %v621 = vld [vmem:[#allocation2 + $0x28] sm:$0xff]
          %v622 = vld [vmem:[#allocation2 + $0x30] sm:$0xff]
          %v623 = vld [vmem:[#allocation2 + $0x38] sm:$0xff]
          %v624 = vld [vmem:[#allocation9] sm:$0xff]
          %v625 = vld [vmem:[#allocation9 + $0x8] sm:$0xff]
          %v626 = vld [vmem:[#allocation9 + $0x10] sm:$0xff]
          %v627 = vld [vmem:[#allocation9 + $0x18] sm:$0xff]
          %v628 = vld [vmem:[#allocation9 + $0x20] sm:$0xff]
          %v629 = vld [vmem:[#allocation9 + $0x28] sm:$0xff]
          %v630 = vld [vmem:[#allocation9 + $0x30] sm:$0xff]
          %v631 = vld [vmem:[#allocation9 + $0x38] sm:$0xff]
          %v632 = vld [vmem:[#allocation3] sm:$0xff]
          %v633 = vld [vmem:[#allocation3 + $0x8] sm:$0xff]
          %v634 = vld [vmem:[#allocation3 + $0x10] sm:$0xff]
          %v635 = vld [vmem:[#allocation3 + $0x18] sm:$0xff]
          %v636 = vld [vmem:[#allocation3 + $0x20] sm:$0xff]
          %v637 = vld [vmem:[#allocation3 + $0x28] sm:$0xff]
          %v638 = vld [vmem:[#allocation3 + $0x30] sm:$0xff]
          %v639 = vld [vmem:[#allocation3 + $0x38] sm:$0xff]
          %641 = vset.pattern.permute.xlu0 0
          %642 = vperm.xlu0 %641, %v632
          %v643 = vpop.permute.xlu0 %642
          %646 = vset.pattern.permute.xlu0 0
          %647 = vperm.xlu0 %646, %v633
          %v648 = vpop.permute.xlu0 %647
          %651 = vset.pattern.permute.xlu0 0
          %652 = vperm.xlu0 %651, %v634
          %v653 = vpop.permute.xlu0 %652
          %656 = vset.pattern.permute.xlu0 0
          %657 = vperm.xlu0 %656, %v635
          %v658 = vpop.permute.xlu0 %657
          %661 = vset.pattern.permute.xlu0 0
          %662 = vperm.xlu0 %661, %v636
          %v663 = vpop.permute.xlu0 %662
          %666 = vset.pattern.permute.xlu0 0
          %667 = vperm.xlu0 %666, %v637
          %v668 = vpop.permute.xlu0 %667
          %671 = vset.pattern.permute.xlu0 0
          %672 = vperm.xlu0 %671, %v638
          %v673 = vpop.permute.xlu0 %672
          %676 = vset.pattern.permute.xlu0 0
          %677 = vperm.xlu0 %676, %v639
          %v678 = vpop.permute.xlu0 %677
          %v680 = vmul.f32 %v624, %v643
          %v681 = vmul.f32 %v625, %v648
          %v682 = vmul.f32 %v626, %v653
          %v683 = vmul.f32 %v627, %v658
          %v684 = vmul.f32 %v628, %v663
          %v685 = vmul.f32 %v629, %v668
          %v686 = vmul.f32 %v630, %v673
          %v687 = vmul.f32 %v631, %v678
          %v688 = vsub.f32 %v616, %v680
          %v689 = vsub.f32 %v617, %v681
          %v690 = vsub.f32 %v618, %v682
          %v691 = vsub.f32 %v619, %v683
          %v692 = vsub.f32 %v620, %v684
          %v693 = vsub.f32 %v621, %v685
          %v694 = vsub.f32 %v622, %v686
          %v695 = vsub.f32 %v623, %v687
          %v696 = vmul.f32 %v688, %v688
          %v697 = vmul.f32 %v689, %v689
          %v698 = vmul.f32 %v690, %v690
          %v699 = vmul.f32 %v691, %v691
          %v700 = vmul.f32 %v692, %v692
          %v701 = vmul.f32 %v693, %v693
          %v702 = vmul.f32 %v694, %v694
          %v703 = vmul.f32 %v695, %v695
          %704 = vadd.xlane.f32.xlu0 %v696
          %v705 = vpop.xlane.xlu0 %704
          %706 = vadd.xlane.f32.xlu0 %v697
          %v707 = vpop.xlane.xlu0 %706
          %708 = vadd.xlane.f32.xlu0 %v698
          %v709 = vpop.xlane.xlu0 %708
          %710 = vadd.xlane.f32.xlu0 %v699
          %v711 = vpop.xlane.xlu0 %710
          %712 = vadd.xlane.f32.xlu0 %v700
          %v713 = vpop.xlane.xlu0 %712
          %714 = vadd.xlane.f32.xlu0 %v701
          %v715 = vpop.xlane.xlu0 %714
          %716 = vadd.xlane.f32.xlu0 %v702
          %v717 = vpop.xlane.xlu0 %716
          %718 = vadd.xlane.f32.xlu0 %v703
          %v719 = vpop.xlane.xlu0 %718
          %v720 = vmax.f32 %v705, 1e-24
          %v721 = vmax.f32 %v707, 1e-24
          %v722 = vmax.f32 %v709, 1e-24
          %v723 = vmax.f32 %v711, 1e-24
          %v724 = vmax.f32 %v713, 1e-24
          %v725 = vmax.f32 %v715, 1e-24
          %v726 = vmax.f32 %v717, 1e-24
          %v727 = vmax.f32 %v719, 1e-24
          %v728 = vrsqrt.pop %v720
          %v729 = vrsqrt.pop %v721
          %v730 = vrsqrt.pop %v722
          %v731 = vrsqrt.pop %v723
          %v732 = vrsqrt.pop %v724
          %v733 = vrsqrt.pop %v725
          %v734 = vrsqrt.pop %v726
          %v735 = vrsqrt.pop %v727
          %v736 = vmul.f32 %v728, %v728
          %v737 = vmul.f32 %v729, %v729
          %v738 = vmul.f32 %v730, %v730
          %v739 = vmul.f32 %v731, %v731
          %v740 = vmul.f32 %v732, %v732
          %v741 = vmul.f32 %v733, %v733
          %v742 = vmul.f32 %v734, %v734
          %v743 = vmul.f32 %v735, %v735
          %v744 = vmul.f32 %v705, %v736
          %v745 = vmul.f32 %v707, %v737
          %v746 = vmul.f32 %v709, %v738
          %v747 = vmul.f32 %v711, %v739
          %v748 = vmul.f32 %v713, %v740
          %v749 = vmul.f32 %v715, %v741
          %v750 = vmul.f32 %v717, %v742
          %v751 = vmul.f32 %v719, %v743
          %v752 = vadd.f32 %v744, %v745
          %v753 = vadd.f32 %v752, %v746
          %v754 = vadd.f32 %v753, %v747
          %v755 = vadd.f32 %v754, %v748
          %v756 = vadd.f32 %v755, %v749
          %v757 = vadd.f32 %v756, %v750
          %v758 = vadd.f32 %v757, %v751
          %v759 = vrot.slane %v758, 4
          %v760 = vadd.f32 %v758, %v759
          %v761 = vrot.slane %v760, 2
          %v762 = vadd.f32 %v760, %v761
          %v763 = vrot.slane %v762, 1
          %v764 = vadd.f32 %v762, %v763
          %v765 = vmax.f32 %v764, 1e-24
          %v766 = vrsqrt.pop %v765
          %v767 = vmul.f32 %v728, %v766
          %v768 = vmul.f32 %v729, %v766
          %v769 = vmul.f32 %v730, %v766
          %v770 = vmul.f32 %v731, %v766
          %v771 = vmul.f32 %v732, %v766
          %v772 = vmul.f32 %v733, %v766
          %v773 = vmul.f32 %v734, %v766
          %v774 = vmul.f32 %v735, %v766
          %v775 = vmul.f32 %v688, %v767
          %v776 = vmul.f32 %v689, %v768
          %v777 = vmul.f32 %v690, %v769
          %v778 = vmul.f32 %v691, %v770
          %v779 = vmul.f32 %v692, %v771
          %v780 = vmul.f32 %v693, %v772
          %v781 = vmul.f32 %v694, %v773
          %v782 = vmul.f32 %v695, %v774
          %783 = vst [vmem:[%s232] sm:$0xff] %v775
          %784 = vst [vmem:[%s232 + $0x8] sm:$0xff] %v776
          %785 = vst [vmem:[%s232 + $0x10] sm:$0xff] %v777
          %786 = vst [vmem:[%s232 + $0x18] sm:$0xff] %v778
          %787 = vst [vmem:[%s232 + $0x20] sm:$0xff] %v779
          %788 = vst [vmem:[%s232 + $0x28] sm:$0xff] %v780
          %789 = vst [vmem:[%s232 + $0x30] sm:$0xff] %v781
          %790 = vst [vmem:[%s232 + $0x38] sm:$0xff] %v782
        $region52: #{tpu_custom_call.1} parent=31 // pred_fallthru
          _
        %s791 = sand.u32 %s111, 1
        %s792 = scalar_lea.sflag [#allocation6], %s791
        %s793 = sand.u32 %s111, 1
        %s794 = smul.addr %s793, 64
        %s795 = scalar_lea.vmem [#allocation10], %s794
        // Predicated region
        $region53: #{tpu_custom_call.1} parent=31 // pred_check
          %p796 = pneg %p121
        $region54: #{tpu_custom_call.1} parent=31 // pred_check_branch
          %798 = sbr.rel (%p796) target = $region56
        $region55: #{tpu_custom_call.1} parent=31 // pred_region
          %s800 = ssub.s32 1024, 1024
          %801 = vsyncadd %s792, %s800
          %s802 = smul.addr %s25, 8
          %s803 = smul.addr %s802, 128
          %s804 = scalar_lea.hbm %s3, %s803
          %s805 = sshll.u32 %s795, 4
          %s806 = int_to_ptr.vmem [resolvable:$true] %s805
          %811 = dma.vmem_to_hbm [thread:$0]  %s806, 1024, %s804, %s792, 128, 128, 8
        $region56: #{tpu_custom_call.1} parent=31 // pred_fallthru
          _
      $region32: #{tpu_custom_call.1} parent=5 // pred_fallthru
        _
      %p812 = scmp.le.s32.totalorder 2, %s16
      // Predicated region
      $region57: #{tpu_custom_call.1} parent=5 // pred_check
        %p813 = pneg %p812
      $region58: #{tpu_custom_call.1} parent=5 // pred_check_branch
        %815 = sbr.rel (%p813) target = $region60
      $region59: #{tpu_custom_call.1} parent=5 // pred_region
        %s816 = ssub.s32 %s16, 2
        // Predicated region
        $region61: #{tpu_custom_call.1} parent=59 // pred_check
          %p817 = pneg %p127
        $region62: #{tpu_custom_call.1} parent=59 // pred_check_branch
          %819 = sbr.rel (%p817) target = $region64
        $region63: #{tpu_custom_call.1} parent=59 // pred_region
          %s820 = sand.u32 %s112, 1
          %s821 = scalar_lea.sflag [#allocation6], %s820
          %s822 = sand.u32 %s112, 1
          %s823 = smul.addr %s822, 64
          %s824 = scalar_lea.vmem [#allocation10], %s823
          %825 = dma.done %s821, 1024
        $region64: #{tpu_custom_call.1} parent=59 // pred_fallthru
          _
      $region60: #{tpu_custom_call.1} parent=5 // pred_fallthru
        _
    $region6: #{tpu_custom_call.1} parent=1 // loop_footer
      %s20 = sadd.s32 1, %s16
    $region7: #{tpu_custom_call.1} parent=1 // loop_footer_branch
      %15 = sbr.rel target = $region3
    $region8: #{tpu_custom_call.1} parent=1 // loop_exit
      _
    %826 = vsyncpa [#allocation5], 1
    %s827 = scalar_lea.sflag [#allocation5], 1
    %828 = vsyncpa %s827, 1
    %829 = vsyncpa [#allocation8], 1
    %830 = vsyncpa [#allocation6], 1
    %s831 = scalar_lea.sflag [#allocation6], 1
    %832 = vsyncpa %s831, 1

// kernel: tpu_custom_call.1
$region0: #{tpu_custom_call.1}
  #allocation0 [shape = 'u32[]', space=smem, size = 0x4, offset = 0x4, fixed_abs, tag = 'smem constant byte address 0x4 - core index']
  #allocation1 [shape = 'u32[144,128]{1,0:T(1,128)}', space=vmem, size = 0x12000, scoped, tag = 'internal scratch']
  #allocation2 [shape = 'f32[64,128]{1,0:T(8,128)}', space=vmem, size = 0x8000, scoped, tag = 'scratch operand']
  #allocation3 [shape = 'f32[64,1]{1,0:T(8,128)}', space=vmem, size = 0x8000, scoped, tag = 'scratch operand']
  %s0 = inlined_call_operand.hbm [shape: f32[2,128,256], index: 0, kind: input, shape index: {}]
  %s1 = inlined_call_operand.hbm [shape: f32[64,128], index: 1, kind: input, shape index: {}]
  %s2 = inlined_call_operand.hbm [shape: f32[64,128], index: 2, kind: input, shape index: {}]
  %s3 = inlined_call_operand.hbm [shape: f32[2,64,128], index: 3, kind: output, shape index: {}]
  %s4 = sld [smem:[#allocation0]]
  $region65: #{tpu_custom_call.1} parent=0
    _
  %s6 = ssub.s32 1, %s4
  %s7 = scalar_select 0, %s6, %s4
  $region1: #{tpu_custom_call.1} parent=0
    #allocation4 [shape = 'u8[131072]{0}', space=vmem, size = 0x20000, scoped, tag = 'input window, operand 0']
    #allocation5 [shape = 's32[2]{0}', space=sflag, size = 0x8, scoped, tag = 'scoped memory for tpu_custom_call.1']
    #allocation6 [shape = 's32[2]{0}', space=sflag, size = 0x8, scoped, tag = 'scoped memory for tpu_custom_call.1']
    #allocation7 [shape = 'u8[32768]{0}', space=vmem, size = 0x8000, scoped, tag = 'input window, operand 1, single buffered']
    #allocation8 [shape = 's32[1]{0}', space=sflag, size = 0x4, scoped, tag = 'scoped memory for tpu_custom_call.1']
    #allocation9 [shape = 'u8[32768]{0}', space=vmem, size = 0x8000, scoped, tag = 'input window, operand 2, single buffered']
    #allocation10 [shape = 'u8[65536]{0}', space=vmem, size = 0x10000, scoped, tag = 'output window, operand 0']
    %8 = vsyncpa [#allocation5], 0
    %s9 = scalar_lea.sflag [#allocation5], 1
    %10 = vsyncpa %s9, 0
    %11 = vsyncpa [#allocation8], 0
    %12 = vsyncpa [#allocation6], 0
    %s13 = scalar_lea.sflag [#allocation6], 1
    %14 = vsyncpa %s13, 0
    loop: start=0, step=1, limit=6
    $region2: #{tpu_custom_call.1} parent=1 // loop_pre_header
      _
    $region3: #{tpu_custom_call.1} parent=1 // loop_header
      %s16 = sphi 0, %s20
      %p17 = scmp.ge.s32.totalorder %s16, 6
      %s23 = sphi 0, %s35
      %s24 = sphi 0, %s31
      %s25 = sphi 0, %s23
      %s26 = sphi 0, %s24
      %s27 = sphi 0, %s25
      %s28 = sphi 0, %s26
      %s40 = sphi 0, %s42
      %s43 = sphi 0, %s40
      %s44 = sphi 0, %s43
      %s60 = sphi 0, %s44
      %s64 = sphi 0, %s64
      %s66 = sphi 0, %s64
      %s67 = sphi 0, %s66
      %s81 = sphi 0, %s67
      %s85 = sphi 0, %s85
      %s87 = sphi 0, %s85
      %s88 = sphi 0, %s87
      %s102 = sphi 0, %s88
      %s108 = sphi 0, %s110
      %s111 = sphi 0, %s108
      %s112 = sphi 0, %s111
      %s128 = sphi 0, %s112
    $region4: #{tpu_custom_call.1} parent=1 // loop_header_branch
      %19 = sbr.rel (%p17) target = $region8
    $region5: #{tpu_custom_call.1} parent=1 // loop_body
      %s21 = ssub.s32 %s16, 1
      %s22 = ssub.s32 %s16, 2
      %s29 = sadd.s32 1, %s24
      %p30 = scmp.ge.s32.totalorder %s29, 2
      %s31 = scalar_select %p30, 0, %s29
      %s32 = sadd.s32 1, %s23
      %s33 = scalar_select %p30, %s32, %s23
      %p34 = scmp.ge.s32.totalorder %s33, 2
      %s35 = scalar_select %p34, 0, %s33
      %s36 = ssub.s32 %s23, %s35
      %s37 = ssub.s32 %s24, %s31
      %s38 = sor.u32 %s36, %s37
      %p39 = scmp.eq.s32.totalorder %s38, 0
      %s41 = sadd.s32 %s40, 1
      %s42 = scalar_select %p39, %s40, %s41
      %p45 = pneg %p39
      %p46 = scmp.eq.s32.totalorder %s16, 3
      %p47 = por %p45, %p46
      %p48 = scmp.ne.s32.totalorder %s40, %s43
      %p49 = scmp.eq.s32.totalorder %s16, 0
      %p50 = por %p48, %p49
      %p51 = scmp.ne.s32.totalorder %s40, %s43
      %p52 = scmp.eq.s32.totalorder %s21, 3
      %p53 = por %p51, %p52
      %p54 = scmp.ne.s32.totalorder %s43, %s44
      %p55 = scmp.eq.s32.totalorder %s21, 0
      %p56 = por %p54, %p55
      %p57 = scmp.ne.s32.totalorder %s43, %s44
      %p58 = scmp.eq.s32.totalorder %s22, 3
      %p59 = por %p57, %p58
      %p61 = scmp.ne.s32.totalorder %s44, %s60
      %p62 = scmp.eq.s32.totalorder %s22, 0
      %p63 = por %p61, %p62
      %s65 = sadd.s32 %s64, 1
      %p68 = scmp.eq.s32.totalorder %s16, 3
      %p69 = scmp.ne.s32.totalorder %s64, %s66
      %p70 = scmp.eq.s32.totalorder %s16, 0
      %p71 = por %p69, %p70
      %p72 = scmp.ne.s32.totalorder %s64, %s66
      %p73 = scmp.eq.s32.totalorder %s21, 3
      %p74 = por %p72, %p73
      %p75 = scmp.ne.s32.totalorder %s66, %s67
      %p76 = scmp.eq.s32.totalorder %s21, 0
      %p77 = por %p75, %p76
      %p78 = scmp.ne.s32.totalorder %s66, %s67
      %p79 = scmp.eq.s32.totalorder %s22, 3
      %p80 = por %p78, %p79
      %p82 = scmp.ne.s32.totalorder %s67, %s81
      %p83 = scmp.eq.s32.totalorder %s22, 0
      %p84 = por %p82, %p83
      %s86 = sadd.s32 %s85, 1
      %p89 = scmp.eq.s32.totalorder %s16, 3
      %p90 = scmp.ne.s32.totalorder %s85, %s87
      %p91 = scmp.eq.s32.totalorder %s16, 0
      %p92 = por %p90, %p91
      %p93 = scmp.ne.s32.totalorder %s85, %s87
      %p94 = scmp.eq.s32.totalorder %s21, 3
      %p95 = por %p93, %p94
      %p96 = scmp.ne.s32.totalorder %s87, %s88
      %p97 = scmp.eq.s32.totalorder %s21, 0
      %p98 = por %p96, %p97
      %p99 = scmp.ne.s32.totalorder %s87, %s88
      %p100 = scmp.eq.s32.totalorder %s22, 3
      %p101 = por %p99, %p100
      %p103 = scmp.ne.s32.totalorder %s88, %s102
      %p104 = scmp.eq.s32.totalorder %s22, 0
      %p105 = por %p103, %p104
      %s106 = ssub.s32 %s23, %s35
      %p107 = scmp.eq.s32.totalorder %s106, 0
      %s109 = sadd.s32 %s108, 1
      %s110 = scalar_select %p107, %s108, %s109
      %p113 = pneg %p107
      %p114 = scmp.eq.s32.totalorder %s16, 3
      %p115 = por %p113, %p114
      %p116 = scmp.ne.s32.totalorder %s108, %s111
      %p117 = scmp.eq.s32.totalorder %s16, 0
      %p118 = por %p116, %p117
      %p119 = scmp.ne.s32.totalorder %s108, %s111
      %p120 = scmp.eq.s32.totalorder %s21, 3
      %p121 = por %p119, %p120
      %p122 = scmp.ne.s32.totalorder %s111, %s112
      %p123 = scmp.eq.s32.totalorder %s21, 0
      %p124 = por %p122, %p123
      %p125 = scmp.ne.s32.totalorder %s111, %s112
      %p126 = scmp.eq.s32.totalorder %s22, 3
      %p127 = por %p125, %p126
      %p129 = scmp.ne.s32.totalorder %s112, %s128
      %p130 = scmp.eq.s32.totalorder %s22, 0
      %p131 = por %p129, %p130
      %p132 = scmp.le.s32.totalorder 1, %s16
      %p133 = scmp.lt.s32.totalorder %s16, 5
      %p134 = pnand %p132, %p133
      %p135 = pneg %p134
      // Predicated region
      $region9: #{tpu_custom_call.1} parent=5 // pred_check
        _
      $region10: #{tpu_custom_call.1} parent=5 // pred_check_branch
        %137 = sbr.rel (%p134) target = $region12
      $region11: #{tpu_custom_call.1} parent=5 // pred_region
        %s138 = ssub.s32 %s16, 1
        // Predicated region
        $region13: #{tpu_custom_call.1} parent=11 // pred_check
          %p139 = pneg %p77
        $region14: #{tpu_custom_call.1} parent=11 // pred_check_branch
          %141 = sbr.rel (%p139) target = $region16
        $region15: #{tpu_custom_call.1} parent=11 // pred_region
          %s143 = ssub.s32 1024, 1024
          %144 = vsyncadd [#allocation8], %s143
          %s145 = sshll.u32 [#allocation7], 4
          %s146 = int_to_ptr.vmem [resolvable:$true] %s145
          %151 = dma.hbm_to_vmem [thread:$0]  %s1, 1024, %s146, [#allocation8], 128, 128, 8
        $region16: #{tpu_custom_call.1} parent=11 // pred_fallthru
          _
        // Predicated region
        $region17: #{tpu_custom_call.1} parent=11 // pred_check
          %p152 = pneg %p98
        $region18: #{tpu_custom_call.1} parent=11 // pred_check_branch
          %154 = sbr.rel (%p152) target = $region20
        $region19: #{tpu_custom_call.1} parent=11 // pred_region
          %s156 = ssub.s32 1024, 1024
          %157 = vsyncadd [#allocation8], %s156
          %s158 = sshll.u32 [#allocation9], 4
          %s159 = int_to_ptr.vmem [resolvable:$true] %s158
          %164 = dma.hbm_to_vmem [thread:$0]  %s2, 1024, %s159, [#allocation8], 128, 128, 8
        $region20: #{tpu_custom_call.1} parent=11 // pred_fallthru
          _
      $region12: #{tpu_custom_call.1} parent=5 // pred_fallthru
        _
      %p165 = scmp.lt.s32.totalorder %s16, 4
      // Predicated region
      $region21: #{tpu_custom_call.1} parent=5 // pred_check
        %p166 = pneg %p165
      $region22: #{tpu_custom_call.1} parent=5 // pred_check_branch
        %168 = sbr.rel (%p166) target = $region24
      $region23: #{tpu_custom_call.1} parent=5 // pred_region
        // Predicated region
        $region25: #{tpu_custom_call.1} parent=23 // pred_check
          %p169 = pneg %p50
        $region26: #{tpu_custom_call.1} parent=23 // pred_check_branch
          %171 = sbr.rel (%p169) target = $region28
        $region27: #{tpu_custom_call.1} parent=23 // pred_region
          %s172 = sand.u32 %s40, 1
          %s173 = scalar_lea.sflag [#allocation5], %s172
          %s174 = sand.u32 %s40, 1
          %s175 = smul.addr %s174, 128
          %s176 = scalar_lea.vmem [#allocation4], %s175
          %s178 = ssub.s32 2048, 2048
          %179 = vsyncadd %s173, %s178
          %s180 = smul.addr %s23, 32
          %s181 = sadd.s32 %s24, %s180
          %s182 = smul.addr %s181, 128
          %s183 = scalar_lea.hbm %s0, %s182
          %s184 = sshll.u32 %s176, 4
          %s185 = int_to_ptr.vmem [resolvable:$true] %s184
          %190 = dma.hbm_to_vmem [thread:$0]  %s183, 2048, %s185, %s173, 256, 128, 8
        $region28: #{tpu_custom_call.1} parent=23 // pred_fallthru
          _
      $region24: #{tpu_custom_call.1} parent=5 // pred_fallthru
        _
      %p191 = scmp.le.s32.totalorder 1, %s16
      %p192 = scmp.lt.s32.totalorder %s16, 5
      %p193 = pnand %p191, %p192
      %p194 = pneg %p193
      // Predicated region
      $region29: #{tpu_custom_call.1} parent=5 // pred_check
        _
      $region30: #{tpu_custom_call.1} parent=5 // pred_check_branch
        %196 = sbr.rel (%p193) target = $region32
      $region31: #{tpu_custom_call.1} parent=5 // pred_region
        %s197 = ssub.s32 %s16, 1
        %s198 = sand.u32 %s43, 1
        %s199 = scalar_lea.sflag [#allocation5], %s198
        %s200 = sand.u32 %s43, 1
        %s201 = smul.addr %s200, 128
        %s202 = scalar_lea.vmem [#allocation4], %s201
        // Predicated region
        $region33: #{tpu_custom_call.1} parent=31 // pred_check
          %p203 = pneg %p56
        $region34: #{tpu_custom_call.1} parent=31 // pred_check_branch
          %205 = sbr.rel (%p203) target = $region36
        $region35: #{tpu_custom_call.1} parent=31 // pred_region
          %206 = dma.done %s199, 2048
        $region36: #{tpu_custom_call.1} parent=31 // pred_fallthru
          _
        // Predicated region
        $region37: #{tpu_custom_call.1} parent=31 // pred_check
          %p207 = pneg %p77
        $region38: #{tpu_custom_call.1} parent=31 // pred_check_branch
          %209 = sbr.rel (%p207) target = $region40
        $region39: #{tpu_custom_call.1} parent=31 // pred_region
          %210 = dma.done [#allocation8], 1024
        $region40: #{tpu_custom_call.1} parent=31 // pred_fallthru
          _
        // Predicated region
        $region41: #{tpu_custom_call.1} parent=31 // pred_check
          %p211 = pneg %p98
        $region42: #{tpu_custom_call.1} parent=31 // pred_check_branch
          %213 = sbr.rel (%p211) target = $region44
        $region43: #{tpu_custom_call.1} parent=31 // pred_region
          %214 = dma.done [#allocation8], 1024
        $region44: #{tpu_custom_call.1} parent=31 // pred_fallthru
          _
        %s215 = sand.u32 %s43, 1
        %s216 = scalar_lea.sflag [#allocation5], %s215
        %s217 = sand.u32 %s43, 1
        %s218 = smul.addr %s217, 128
        %s219 = scalar_lea.vmem [#allocation4], %s218
        %p220 = pneg %p56
        %p221 = pneg %p53
        %p222 = pneg %p77
        %p223 = pneg %p74
        %p224 = pneg %p98
        %p225 = pneg %p95
        %p226 = pneg %p124
        %p227 = pneg %p121
        %s228 = sand.u32 %s111, 1
        %s229 = scalar_lea.sflag [#allocation6], %s228
        %s230 = sand.u32 %s111, 1
        %s231 = smul.addr %s230, 64
        %s232 = scalar_lea.vmem [#allocation10], %s231
        %p233 = scmp.eq.s32.totalorder %s26, 0
        // Predicated region
        $region45: #{tpu_custom_call.1} parent=31 // pred_check
          %p234 = pneg %p233
        $region46: #{tpu_custom_call.1} parent=31 // pred_check_branch
          %236 = sbr.rel (%p234) target = $region48
        $region47: #{tpu_custom_call.1} parent=31 // pred_region
          %237 = vst [vmem:[#allocation2] sm:$0xff] 0.0
          %238 = vst [vmem:[#allocation2 + $0x8] sm:$0xff] 0.0
          %239 = vst [vmem:[#allocation2 + $0x10] sm:$0xff] 0.0
          %240 = vst [vmem:[#allocation2 + $0x18] sm:$0xff] 0.0
          %241 = vst [vmem:[#allocation2 + $0x20] sm:$0xff] 0.0
          %242 = vst [vmem:[#allocation2 + $0x28] sm:$0xff] 0.0
          %243 = vst [vmem:[#allocation2 + $0x30] sm:$0xff] 0.0
          %244 = vst [vmem:[#allocation2 + $0x38] sm:$0xff] 0.0
          %vm245 = vcmask 7168
          %246 = vst.msk [vmem:[#allocation3] sm:$0xff] %vm245, 0.0
          %247 = vst.msk [vmem:[#allocation3 + $0x8] sm:$0xff] %vm245, 0.0
          %248 = vst.msk [vmem:[#allocation3 + $0x10] sm:$0xff] %vm245, 0.0
          %249 = vst.msk [vmem:[#allocation3 + $0x18] sm:$0xff] %vm245, 0.0
          %250 = vst.msk [vmem:[#allocation3 + $0x20] sm:$0xff] %vm245, 0.0
          %251 = vst.msk [vmem:[#allocation3 + $0x28] sm:$0xff] %vm245, 0.0
          %252 = vst.msk [vmem:[#allocation3 + $0x30] sm:$0xff] %vm245, 0.0
          %253 = vst.msk [vmem:[#allocation3 + $0x38] sm:$0xff] %vm245, 0.0
        $region48: #{tpu_custom_call.1} parent=31 // pred_fallthru
          _
        %v254 = vld [vmem:[%s202] sm:$0xff]
        %v255 = vld [vmem:[%s202 + $0x8] sm:$0xff]
        %v256 = vld [vmem:[%s202 + $0x10] sm:$0xff]
        %v257 = vld [vmem:[%s202 + $0x18] sm:$0xff]
        %v258 = vld [vmem:[%s202 + $0x20] sm:$0xff]
        %v259 = vld [vmem:[%s202 + $0x28] sm:$0xff]
        %v260 = vld [vmem:[%s202 + $0x30] sm:$0xff]
        %v261 = vld [vmem:[%s202 + $0x38] sm:$0xff]
        %v262 = vld [vmem:[%s202 + $0x40] sm:$0xff]
        %v263 = vld [vmem:[%s202 + $0x48] sm:$0xff]
        %v264 = vld [vmem:[%s202 + $0x50] sm:$0xff]
        %v265 = vld [vmem:[%s202 + $0x58] sm:$0xff]
        %v266 = vld [vmem:[%s202 + $0x60] sm:$0xff]
        %v267 = vld [vmem:[%s202 + $0x68] sm:$0xff]
        %v268 = vld [vmem:[%s202 + $0x70] sm:$0xff]
        %v269 = vld [vmem:[%s202 + $0x78] sm:$0xff]
        %v270 = vld [vmem:[#allocation7] sm:$0xff]
        %v271 = vld [vmem:[#allocation7 + $0x8] sm:$0xff]
        %v272 = vld [vmem:[#allocation7 + $0x10] sm:$0xff]
        %v273 = vld [vmem:[#allocation7 + $0x18] sm:$0xff]
        %v274 = vld [vmem:[#allocation7 + $0x20] sm:$0xff]
        %v275 = vld [vmem:[#allocation7 + $0x28] sm:$0xff]
        %v276 = vld [vmem:[#allocation7 + $0x30] sm:$0xff]
        %v277 = vld [vmem:[#allocation7 + $0x38] sm:$0xff]
        %278 = vmatprep.subr.mxu0 0.0
        %279 = vmatpush1.msra.mxu0 %v254
        %280 = vmatprep.subr.mxu0 0.0
        %281 = vmatpush1.msra.mxu0 %v255
        %282 = vmatprep.subr.mxu0 0.0
        %283 = vmatpush1.msra.mxu0 %v256
        %284 = vmatprep.subr.mxu0 0.0
        %285 = vmatpush1.msra.mxu0 %v257
        %286 = vmatprep.subr.mxu0 0.0
        %287 = vmatpush1.msra.mxu0 %v258
        %288 = vmatprep.subr.mxu0 0.0
        %289 = vmatpush1.msra.mxu0 %v259
        %290 = vmatprep.subr.mxu0 0.0
        %291 = vmatpush1.msra.mxu0 %v260
        %292 = vmatprep.subr.mxu0 0.0
        %293 = vmatpush1.msra.mxu0 %v261
        %294 = vmatprep.subr.mxu0 0.0
        %295 = vmatpush1.msra.mxu0 %v262
        %296 = vmatprep.subr.mxu0 0.0
        %297 = vmatpush1.msra.mxu0 %v263
        %298 = vmatprep.subr.mxu0 0.0
        %299 = vmatpush1.msra.mxu0 %v264
        %300 = vmatprep.subr.mxu0 0.0
        %301 = vmatpush1.msra.mxu0 %v265
        %302 = vmatprep.subr.mxu0 0.0
        %303 = vmatpush1.msra.mxu0 %v266
        %304 = vmatprep.subr.mxu0 0.0
        %305 = vmatpush1.msra.mxu0 %v267
        %306 = vmatprep.subr.mxu0 0.0
        %307 = vmatpush1.msra.mxu0 %v268
        %308 = vmatprep.subr.mxu0 0.0
        %309 = vmatpush1.msra.mxu0 %v269
        %310 = vmatprep.subr.mxu0 0.0
        %311 = vmatpush1.msra.mxu0 0.0
        %312 = vmatprep.subr.mxu0 0.0
        %313 = vmatpush1.msra.mxu0 0.0
        %314 = vmatprep.subr.mxu0 0.0
        %315 = vmatpush1.msra.mxu0 0.0
        %316 = vmatprep.subr.mxu0 0.0
        %317 = vmatpush1.msra.mxu0 0.0
        %318 = vmatprep.subr.mxu0 0.0
        %319 = vmatpush1.msra.mxu0 0.0
        %320 = vmatprep.subr.mxu0 0.0
        %321 = vmatpush1.msra.mxu0 0.0
        %322 = vmatprep.subr.mxu0 0.0
        %323 = vmatpush1.msra.mxu0 0.0
        %324 = vmatprep.subr.mxu0 0.0
        %325 = vmatpush1.msra.mxu0 0.0
        %326 = vmatprep.subr.mxu0 0.0
        %327 = vmatpush1.msra.mxu0 0.0
        %328 = vmatprep.subr.mxu0 0.0
        %329 = vmatpush1.msra.mxu0 0.0
        %330 = vmatprep.subr.mxu0 0.0
        %331 = vmatpush1.msra.mxu0 0.0
        %332 = vmatprep.subr.mxu0 0.0
        %333 = vmatpush1.msra.mxu0 0.0
        %334 = vmatprep.subr.mxu0 0.0
        %335 = vmatpush1.msra.mxu0 0.0
        %336 = vmatprep.subr.mxu0 0.0
        %337 = vmatpush1.msra.mxu0 0.0
        %338 = vmatprep.subr.mxu0 0.0
        %339 = vmatpush1.msra.mxu0 0.0
        %340 = vmatprep.subr.mxu0 0.0
        %341 = vmatpush1.msra.mxu0 0.0
        %342 = vmatprep.mubr.f32.mxu0 0.0
        %343 = vmatmul.mubr.f32.gmra.mrb[0].mxu0 %v270
        %v344 = vpop.f32.mrb[0].mxu0
        %v345 = vadd.f32 0.0, %v344
        %v346 = vpop.f32.mrb[0].mxu0
        %347 = vmatprep.mubr.f32.mxu0 0.0
        %348 = vmatmul.mubr.f32.gmra.mrb[0].mxu0 %v271
        %v349 = vpop.f32.mrb[0].mxu0
        %v350 = vadd.f32 0.0, %v349
        %v351 = vpop.f32.mrb[0].mxu0
        %352 = vmatprep.mubr.f32.mxu0 0.0
        %353 = vmatmul.mubr.f32.gmra.mrb[0].mxu0 %v272
        %v354 = vpop.f32.mrb[0].mxu0
        %v355 = vadd.f32 0.0, %v354
        %v356 = vpop.f32.mrb[0].mxu0
        %357 = vmatprep.mubr.f32.mxu0 0.0
        %358 = vmatmul.mubr.f32.gmra.mrb[0].mxu0 %v273
        %v359 = vpop.f32.mrb[0].mxu0
        %v360 = vadd.f32 0.0, %v359
        %v361 = vpop.f32.mrb[0].mxu0
        %362 = vmatprep.mubr.f32.mxu0 0.0
        %363 = vmatmul.mubr.f32.gmra.mrb[0].mxu0 %v274
        %v364 = vpop.f32.mrb[0].mxu0
        %v365 = vadd.f32 0.0, %v364
        %v366 = vpop.f32.mrb[0].mxu0
        %367 = vmatprep.mubr.f32.mxu0 0.0
        %368 = vmatmul.mubr.f32.gmra.mrb[0].mxu0 %v275
        %v369 = vpop.f32.mrb[0].mxu0
        %v370 = vadd.f32 0.0, %v369
        %v371 = vpop.f32.mrb[0].mxu0
        %372 = vmatprep.mubr.f32.mxu0 0.0
        %373 = vmatmul.mubr.f32.gmra.mrb[0].mxu0 %v276
        %v374 = vpop.f32.mrb[0].mxu0
        %v375 = vadd.f32 0.0, %v374
        %v376 = vpop.f32.mrb[0].mxu0
        %377 = vmatprep.mubr.f32.mxu0 0.0
        %378 = vmatmul.mubr.f32.gmra.mrb[0].mxu0 %v277
        %v379 = vpop.f32.mrb[0].mxu0
        %v380 = vadd.f32 0.0, %v379
        %v381 = vpop.f32.mrb[0].mxu0
        %382 = vdwg.mxu0
        %v383 = vmax.f32 %v345, %v365
        %v384 = vmax.f32 %v350, %v370
        %v385 = vmax.f32 %v355, %v375
        %v386 = vmax.f32 %v360, %v380
        %v387 = vmax.f32 %v383, %v384
        %v388 = vmax.f32 %v385, %v386
        %v389 = vmax.f32 %v387, %v388
        %v390 = vrot.slane %v389, 4
        %v391 = vmax.f32 %v389, %v390
        %v392 = vrot.slane %v391, 2
        %v393 = vmax.f32 %v391, %v392
        %v394 = vrot.slane %v393, 1
        %v395 = vmax.f32 %v393, %v394
        %v396 = vsub.f32 %v345, %v395
        %v397 = vsub.f32 %v350, %v395
        %v398 = vsub.f32 %v355, %v395
        %v399 = vsub.f32 %v360, %v395
        %v400 = vsub.f32 %v365, %v395
        %v401 = vsub.f32 %v370, %v395
        %v402 = vsub.f32 %v375, %v395
        %v403 = vsub.f32 %v380, %v395
        %v404 = vmul.f32 %v396, 1.442695
        %v405 = vpow.pop %v404
        %v406 = vmul.f32 %v397, 1.442695
        %v407 = vpow.pop %v406
        %v408 = vmul.f32 %v398, 1.442695
        %v409 = vpow.pop %v408
        %v410 = vmul.f32 %v399, 1.442695
        %v411 = vpow.pop %v410
        %v412 = vmul.f32 %v400, 1.442695
        %v413 = vpow.pop %v412
        %v414 = vmul.f32 %v401, 1.442695
        %v415 = vpow.pop %v414
        %v416 = vmul.f32 %v402, 1.442695
        %v417 = vpow.pop %v416
        %v418 = vmul.f32 %v403, 1.442695
        %v419 = vpow.pop %v418
        %v420 = vadd.f32 %v405, %v407
        %v421 = vadd.f32 %v420, %v409
        %v422 = vadd.f32 %v421, %v411
        %v423 = vadd.f32 %v422, %v413
        %v424 = vadd.f32 %v423, %v415
        %v425 = vadd.f32 %v424, %v417
        %v426 = vadd.f32 %v425, %v419
        %v427 = vrot.slane %v426, 4
        %v428 = vadd.f32 %v426, %v427
        %v429 = vrot.slane %v428, 2
        %v430 = vadd.f32 %v428, %v429
        %v431 = vrot.slane %v430, 1
        %v432 = vadd.f32 %v430, %v431
        %v433 = vrcp.pop %v432
        %v434 = vmul.f32 %v405, %v433
        %v435 = vmul.f32 %v407, %v433
        %v436 = vmul.f32 %v409, %v433
        %v437 = vmul.f32 %v411, %v433
        %v438 = vmul.f32 %v413, %v433
        %v439 = vmul.f32 %v415, %v433
        %v440 = vmul.f32 %v417, %v433
        %v441 = vmul.f32 %v419, %v433
        %v442 = vld [vmem:[#allocation2] sm:$0xff]
        %v443 = vld [vmem:[#allocation2 + $0x8] sm:$0xff]
        %v444 = vld [vmem:[#allocation2 + $0x10] sm:$0xff]
        %v445 = vld [vmem:[#allocation2 + $0x18] sm:$0xff]
        %v446 = vld [vmem:[#allocation2 + $0x20] sm:$0xff]
        %v447 = vld [vmem:[#allocation2 + $0x28] sm:$0xff]
        %v448 = vld [vmem:[#allocation2 + $0x30] sm:$0xff]
        %v449 = vld [vmem:[#allocation2 + $0x38] sm:$0xff]
        %450 = vmatprep.subr.mxu0 0.0
        %451 = vmatpush1.xpose.msra.mxu0 %v254
        %452 = vmatprep.subr.mxu0 0.0
        %453 = vmatpush1.xpose.msra.mxu0 %v255
        %454 = vmatprep.subr.mxu0 0.0
        %455 = vmatpush1.xpose.msra.mxu0 %v256
        %456 = vmatprep.subr.mxu0 0.0
        %457 = vmatpush1.xpose.msra.mxu0 %v257
        %458 = vmatprep.subr.mxu0 0.0
        %459 = vmatpush1.xpose.msra.mxu0 %v258
        %460 = vmatprep.subr.mxu0 0.0
        %461 = vmatpush1.xpose.msra.mxu0 %v259
        %462 = vmatprep.subr.mxu0 0.0
        %463 = vmatpush1.xpose.msra.mxu0 %v260
        %464 = vmatprep.subr.mxu0 0.0
        %465 = vmatpush1.xpose.msra.mxu0 %v261
        %466 = vmatprep.subr.mxu0 0.0
        %467 = vmatpush1.xpose.msra.mxu0 %v262
        %468 = vmatprep.subr.mxu0 0.0
        %469 = vmatpush1.xpose.msra.mxu0 %v263
        %470 = vmatprep.subr.mxu0 0.0
        %471 = vmatpush1.xpose.msra.mxu0 %v264
        %472 = vmatprep.subr.mxu0 0.0
        %473 = vmatpush1.xpose.msra.mxu0 %v265
        %474 = vmatprep.subr.mxu0 0.0
        %475 = vmatpush1.xpose.msra.mxu0 %v266
        %476 = vmatprep.subr.mxu0 0.0
        %477 = vmatpush1.xpose.msra.mxu0 %v267
        %478 = vmatprep.subr.mxu0 0.0
        %479 = vmatpush1.xpose.msra.mxu0 %v268
        %480 = vmatprep.subr.mxu0 0.0
        %481 = vmatpush1.xpose.msra.mxu0 %v269
        %482 = vmatprep.subr.mxu0 0.0
        %483 = vmatpush1.xpose.msra.mxu0 0.0
        %484 = vmatprep.subr.mxu0 0.0
        %485 = vmatpush1.xpose.msra.mxu0 0.0
        %486 = vmatprep.subr.mxu0 0.0
        %487 = vmatpush1.xpose.msra.mxu0 0.0
        %488 = vmatprep.subr.mxu0 0.0
        %489 = vmatpush1.xpose.msra.mxu0 0.0
        %490 = vmatprep.subr.mxu0 0.0
        %491 = vmatpush1.xpose.msra.mxu0 0.0
        %492 = vmatprep.subr.mxu0 0.0
        %493 = vmatpush1.xpose.msra.mxu0 0.0
        %494 = vmatprep.subr.mxu0 0.0
        %495 = vmatpush1.xpose.msra.mxu0 0.0
        %496 = vmatprep.subr.mxu0 0.0
        %497 = vmatpush1.xpose.msra.mxu0 0.0
        %498 = vmatprep.subr.mxu0 0.0
        %499 = vmatpush1.xpose.msra.mxu0 0.0
        %500 = vmatprep.subr.mxu0 0.0
        %501 = vmatpush1.xpose.msra.mxu0 0.0
        %502 = vmatprep.subr.mxu0 0.0
        %503 = vmatpush1.xpose.msra.mxu0 0.0
        %504 = vmatprep.subr.mxu0 0.0
        %505 = vmatpush1.xpose.msra.mxu0 0.0
        %506 = vmatprep.subr.mxu0 0.0
        %507 = vmatpush1.xpose.msra.mxu0 0.0
        %508 = vmatprep.subr.mxu0 0.0
        %509 = vmatpush1.xpose.msra.mxu0 0.0
        %510 = vmatprep.subr.mxu0 0.0
        %511 = vmatpush1.xpose.msra.mxu0 0.0
        %512 = vmatprep.subr.mxu0 0.0
        %513 = vmatpush1.xpose.msra.mxu0 0.0
        %514 = vmatprep.mubr.f32.mxu0 0.0
        %515 = vmatmul.mubr.f32.gmra.mrb[0].mxu0 %v434
        %v516 = vpop.f32.mrb[0].mxu0
        %v517 = vadd.f32 0.0, %v516
        %v518 = vpop.f32.mrb[0].mxu0
        %519 = vmatprep.mubr.f32.mxu0 0.0
        %520 = vmatmul.mubr.f32.gmra.mrb[0].mxu0 %v435
        %v521 = vpop.f32.mrb[0].mxu0
        %v522 = vadd.f32 0.0, %v521
        %v523 = vpop.f32.mrb[0].mxu0
        %524 = vmatprep.mubr.f32.mxu0 0.0
        %525 = vmatmul.mubr.f32.gmra.mrb[0].mxu0 %v436
        %v526 = vpop.f32.mrb[0].mxu0
        %v527 = vadd.f32 0.0, %v526
        %v528 = vpop.f32.mrb[0].mxu0
        %529 = vmatprep.mubr.f32.mxu0 0.0
        %530 = vmatmul.mubr.f32.gmra.mrb[0].mxu0 %v437
        %v531 = vpop.f32.mrb[0].mxu0
        %v532 = vadd.f32 0.0, %v531
        %v533 = vpop.f32.mrb[0].mxu0
        %534 = vmatprep.mubr.f32.mxu0 0.0
        %535 = vmatmul.mubr.f32.gmra.mrb[0].mxu0 %v438
        %v536 = vpop.f32.mrb[0].mxu0
        %v537 = vadd.f32 0.0, %v536
        %v538 = vpop.f32.mrb[0].mxu0
        %539 = vmatprep.mubr.f32.mxu0 0.0
        %540 = vmatmul.mubr.f32.gmra.mrb[0].mxu0 %v439
        %v541 = vpop.f32.mrb[0].mxu0
        %v542 = vadd.f32 0.0, %v541
        %v543 = vpop.f32.mrb[0].mxu0
        %544 = vmatprep.mubr.f32.mxu0 0.0
        %545 = vmatmul.mubr.f32.gmra.mrb[0].mxu0 %v440
        %v546 = vpop.f32.mrb[0].mxu0
        %v547 = vadd.f32 0.0, %v546
        %v548 = vpop.f32.mrb[0].mxu0
        %549 = vmatprep.mubr.f32.mxu0 0.0
        %550 = vmatmul.mubr.f32.gmra.mrb[0].mxu0 %v441
        %v551 = vpop.f32.mrb[0].mxu0
        %v552 = vadd.f32 0.0, %v551
        %v553 = vpop.f32.mrb[0].mxu0
        %554 = vdwg.mxu0
        %v555 = vadd.f32 %v442, %v517
        %v556 = vadd.f32 %v443, %v522
        %v557 = vadd.f32 %v444, %v527
        %v558 = vadd.f32 %v445, %v532
        %v559 = vadd.f32 %v446, %v537
        %v560 = vadd.f32 %v447, %v542
        %v561 = vadd.f32 %v448, %v547
        %v562 = vadd.f32 %v449, %v552
        %563 = vst [vmem:[#allocation2] sm:$0xff] %v555
        %564 = vst [vmem:[#allocation2 + $0x8] sm:$0xff] %v556
        %565 = vst [vmem:[#allocation2 + $0x10] sm:$0xff] %v557
        %566 = vst [vmem:[#allocation2 + $0x18] sm:$0xff] %v558
        %567 = vst [vmem:[#allocation2 + $0x20] sm:$0xff] %v559
        %568 = vst [vmem:[#allocation2 + $0x28] sm:$0xff] %v560
        %569 = vst [vmem:[#allocation2 + $0x30] sm:$0xff] %v561
        %570 = vst [vmem:[#allocation2 + $0x38] sm:$0xff] %v562
        %v571 = vld [vmem:[#allocation3] sm:$0xff]
        %v572 = vld [vmem:[#allocation3 + $0x8] sm:$0xff]
        %v573 = vld [vmem:[#allocation3 + $0x10] sm:$0xff]
        %v574 = vld [vmem:[#allocation3 + $0x18] sm:$0xff]
        %v575 = vld [vmem:[#allocation3 + $0x20] sm:$0xff]
        %v576 = vld [vmem:[#allocation3 + $0x28] sm:$0xff]
        %v577 = vld [vmem:[#allocation3 + $0x30] sm:$0xff]
        %v578 = vld [vmem:[#allocation3 + $0x38] sm:$0xff]
        %579 = vadd.xlane.f32.xlu0 %v434
        %v580 = vpop.xlane.xlu0 %579
        %581 = vadd.xlane.f32.xlu0 %v435
        %v582 = vpop.xlane.xlu0 %581
        %583 = vadd.xlane.f32.xlu0 %v436
        %v584 = vpop.xlane.xlu0 %583
        %585 = vadd.xlane.f32.xlu0 %v437
        %v586 = vpop.xlane.xlu0 %585
        %587 = vadd.xlane.f32.xlu0 %v438
        %v588 = vpop.xlane.xlu0 %587
        %589 = vadd.xlane.f32.xlu0 %v439
        %v590 = vpop.xlane.xlu0 %589
        %591 = vadd.xlane.f32.xlu0 %v440
        %v592 = vpop.xlane.xlu0 %591
        %593 = vadd.xlane.f32.xlu0 %v441
        %v594 = vpop.xlane.xlu0 %593
        %v595 = vadd.f32 %v571, %v580
        %v596 = vadd.f32 %v572, %v582
        %v597 = vadd.f32 %v573, %v584
        %v598 = vadd.f32 %v574, %v586
        %v599 = vadd.f32 %v575, %v588
        %v600 = vadd.f32 %v576, %v590
        %v601 = vadd.f32 %v577, %v592
        %v602 = vadd.f32 %v578, %v594
        %vm603 = vcmask 7168
        %604 = vst.msk [vmem:[#allocation3] sm:$0xff] %vm603, %v595
        %605 = vst.msk [vmem:[#allocation3 + $0x8] sm:$0xff] %vm603, %v596
        %606 = vst.msk [vmem:[#allocation3 + $0x10] sm:$0xff] %vm603, %v597
        %607 = vst.msk [vmem:[#allocation3 + $0x18] sm:$0xff] %vm603, %v598
        %608 = vst.msk [vmem:[#allocation3 + $0x20] sm:$0xff] %vm603, %v599
        %609 = vst.msk [vmem:[#allocation3 + $0x28] sm:$0xff] %vm603, %v600
        %610 = vst.msk [vmem:[#allocation3 + $0x30] sm:$0xff] %vm603, %v601
        %611 = vst.msk [vmem:[#allocation3 + $0x38] sm:$0xff] %vm603, %v602
        %p612 = scmp.eq.s32.totalorder %s26, 1
        // Predicated region
        $region49: #{tpu_custom_call.1} parent=31 // pred_check
          %p613 = pneg %p612
        $region50: #{tpu_custom_call.1} parent=31 // pred_check_branch
          %615 = sbr.rel (%p613) target = $region52
        $region51: #{tpu_custom_call.1} parent=31 // pred_region
          %v616 = vld [vmem:[#allocation2] sm:$0xff]
          %v617 = vld [vmem:[#allocation2 + $0x8] sm:$0xff]
          %v618 = vld [vmem:[#allocation2 + $0x10] sm:$0xff]
          %v619 = vld [vmem:[#allocation2 + $0x18] sm:$0xff]
          %v620 = vld [vmem:[#allocation2 + $0x20] sm:$0xff]
          %v621 = vld [vmem:[#allocation2 + $0x28] sm:$0xff]
          %v622 = vld [vmem:[#allocation2 + $0x30] sm:$0xff]
          %v623 = vld [vmem:[#allocation2 + $0x38] sm:$0xff]
          %v624 = vld [vmem:[#allocation9] sm:$0xff]
          %v625 = vld [vmem:[#allocation9 + $0x8] sm:$0xff]
          %v626 = vld [vmem:[#allocation9 + $0x10] sm:$0xff]
          %v627 = vld [vmem:[#allocation9 + $0x18] sm:$0xff]
          %v628 = vld [vmem:[#allocation9 + $0x20] sm:$0xff]
          %v629 = vld [vmem:[#allocation9 + $0x28] sm:$0xff]
          %v630 = vld [vmem:[#allocation9 + $0x30] sm:$0xff]
          %v631 = vld [vmem:[#allocation9 + $0x38] sm:$0xff]
          %v632 = vld [vmem:[#allocation3] sm:$0xff]
          %v633 = vld [vmem:[#allocation3 + $0x8] sm:$0xff]
          %v634 = vld [vmem:[#allocation3 + $0x10] sm:$0xff]
          %v635 = vld [vmem:[#allocation3 + $0x18] sm:$0xff]
          %v636 = vld [vmem:[#allocation3 + $0x20] sm:$0xff]
          %v637 = vld [vmem:[#allocation3 + $0x28] sm:$0xff]
          %v638 = vld [vmem:[#allocation3 + $0x30] sm:$0xff]
          %v639 = vld [vmem:[#allocation3 + $0x38] sm:$0xff]
          %641 = vset.pattern.permute.xlu0 0
          %642 = vperm.xlu0 %641, %v632
          %v643 = vpop.permute.xlu0 %642
          %646 = vset.pattern.permute.xlu0 0
          %647 = vperm.xlu0 %646, %v633
          %v648 = vpop.permute.xlu0 %647
          %651 = vset.pattern.permute.xlu0 0
          %652 = vperm.xlu0 %651, %v634
          %v653 = vpop.permute.xlu0 %652
          %656 = vset.pattern.permute.xlu0 0
          %657 = vperm.xlu0 %656, %v635
          %v658 = vpop.permute.xlu0 %657
          %661 = vset.pattern.permute.xlu0 0
          %662 = vperm.xlu0 %661, %v636
          %v663 = vpop.permute.xlu0 %662
          %666 = vset.pattern.permute.xlu0 0
          %667 = vperm.xlu0 %666, %v637
          %v668 = vpop.permute.xlu0 %667
          %671 = vset.pattern.permute.xlu0 0
          %672 = vperm.xlu0 %671, %v638
          %v673 = vpop.permute.xlu0 %672
          %676 = vset.pattern.permute.xlu0 0
          %677 = vperm.xlu0 %676, %v639
          %v678 = vpop.permute.xlu0 %677
          %v680 = vmul.f32 %v624, %v643
          %v681 = vmul.f32 %v625, %v648
          %v682 = vmul.f32 %v626, %v653
          %v683 = vmul.f32 %v627, %v658
          %v684 = vmul.f32 %v628, %v663
          %v685 = vmul.f32 %v629, %v668
          %v686 = vmul.f32 %v630, %v673
          %v687 = vmul.f32 %v631, %v678
          %v688 = vsub.f32 %v616, %v680
          %v689 = vsub.f32 %v617, %v681
          %v690 = vsub.f32 %v618, %v682
          %v691 = vsub.f32 %v619, %v683
          %v692 = vsub.f32 %v620, %v684
          %v693 = vsub.f32 %v621, %v685
          %v694 = vsub.f32 %v622, %v686
          %v695 = vsub.f32 %v623, %v687
          %v696 = vmul.f32 %v688, %v688
          %v697 = vmul.f32 %v689, %v689
          %v698 = vmul.f32 %v690, %v690
          %v699 = vmul.f32 %v691, %v691
          %v700 = vmul.f32 %v692, %v692
          %v701 = vmul.f32 %v693, %v693
          %v702 = vmul.f32 %v694, %v694
          %v703 = vmul.f32 %v695, %v695
          %704 = vadd.xlane.f32.xlu0 %v696
          %v705 = vpop.xlane.xlu0 %704
          %706 = vadd.xlane.f32.xlu0 %v697
          %v707 = vpop.xlane.xlu0 %706
          %708 = vadd.xlane.f32.xlu0 %v698
          %v709 = vpop.xlane.xlu0 %708
          %710 = vadd.xlane.f32.xlu0 %v699
          %v711 = vpop.xlane.xlu0 %710
          %712 = vadd.xlane.f32.xlu0 %v700
          %v713 = vpop.xlane.xlu0 %712
          %714 = vadd.xlane.f32.xlu0 %v701
          %v715 = vpop.xlane.xlu0 %714
          %716 = vadd.xlane.f32.xlu0 %v702
          %v717 = vpop.xlane.xlu0 %716
          %718 = vadd.xlane.f32.xlu0 %v703
          %v719 = vpop.xlane.xlu0 %718
          %v720 = vmax.f32 %v705, 1e-24
          %v721 = vmax.f32 %v707, 1e-24
          %v722 = vmax.f32 %v709, 1e-24
          %v723 = vmax.f32 %v711, 1e-24
          %v724 = vmax.f32 %v713, 1e-24
          %v725 = vmax.f32 %v715, 1e-24
          %v726 = vmax.f32 %v717, 1e-24
          %v727 = vmax.f32 %v719, 1e-24
          %v728 = vrsqrt.pop %v720
          %v729 = vrsqrt.pop %v721
          %v730 = vrsqrt.pop %v722
          %v731 = vrsqrt.pop %v723
          %v732 = vrsqrt.pop %v724
          %v733 = vrsqrt.pop %v725
          %v734 = vrsqrt.pop %v726
          %v735 = vrsqrt.pop %v727
          %v736 = vmul.f32 %v728, %v728
          %v737 = vmul.f32 %v729, %v729
          %v738 = vmul.f32 %v730, %v730
          %v739 = vmul.f32 %v731, %v731
          %v740 = vmul.f32 %v732, %v732
          %v741 = vmul.f32 %v733, %v733
          %v742 = vmul.f32 %v734, %v734
          %v743 = vmul.f32 %v735, %v735
          %v744 = vmul.f32 %v705, %v736
          %v745 = vmul.f32 %v707, %v737
          %v746 = vmul.f32 %v709, %v738
          %v747 = vmul.f32 %v711, %v739
          %v748 = vmul.f32 %v713, %v740
          %v749 = vmul.f32 %v715, %v741
          %v750 = vmul.f32 %v717, %v742
          %v751 = vmul.f32 %v719, %v743
          %v752 = vadd.f32 %v744, %v745
          %v753 = vadd.f32 %v752, %v746
          %v754 = vadd.f32 %v753, %v747
          %v755 = vadd.f32 %v754, %v748
          %v756 = vadd.f32 %v755, %v749
          %v757 = vadd.f32 %v756, %v750
          %v758 = vadd.f32 %v757, %v751
          %v759 = vrot.slane %v758, 4
          %v760 = vadd.f32 %v758, %v759
          %v761 = vrot.slane %v760, 2
          %v762 = vadd.f32 %v760, %v761
          %v763 = vrot.slane %v762, 1
          %v764 = vadd.f32 %v762, %v763
          %v765 = vmax.f32 %v764, 1e-24
          %v766 = vrsqrt.pop %v765
          %v767 = vmul.f32 %v728, %v766
          %v768 = vmul.f32 %v729, %v766
          %v769 = vmul.f32 %v730, %v766
          %v770 = vmul.f32 %v731, %v766
          %v771 = vmul.f32 %v732, %v766
          %v772 = vmul.f32 %v733, %v766
          %v773 = vmul.f32 %v734, %v766
          %v774 = vmul.f32 %v735, %v766
          %v775 = vmul.f32 %v688, %v767
          %v776 = vmul.f32 %v689, %v768
          %v777 = vmul.f32 %v690, %v769
          %v778 = vmul.f32 %v691, %v770
          %v779 = vmul.f32 %v692, %v771
          %v780 = vmul.f32 %v693, %v772
          %v781 = vmul.f32 %v694, %v773
          %v782 = vmul.f32 %v695, %v774
          %783 = vst [vmem:[%s232] sm:$0xff] %v775
          %784 = vst [vmem:[%s232 + $0x8] sm:$0xff] %v776
          %785 = vst [vmem:[%s232 + $0x10] sm:$0xff] %v777
          %786 = vst [vmem:[%s232 + $0x18] sm:$0xff] %v778
          %787 = vst [vmem:[%s232 + $0x20] sm:$0xff] %v779
          %788 = vst [vmem:[%s232 + $0x28] sm:$0xff] %v780
          %789 = vst [vmem:[%s232 + $0x30] sm:$0xff] %v781
          %790 = vst [vmem:[%s232 + $0x38] sm:$0xff] %v782
        $region52: #{tpu_custom_call.1} parent=31 // pred_fallthru
          _
        %s791 = sand.u32 %s111, 1
        %s792 = scalar_lea.sflag [#allocation6], %s791
        %s793 = sand.u32 %s111, 1
        %s794 = smul.addr %s793, 64
        %s795 = scalar_lea.vmem [#allocation10], %s794
        // Predicated region
        $region53: #{tpu_custom_call.1} parent=31 // pred_check
          %p796 = pneg %p121
        $region54: #{tpu_custom_call.1} parent=31 // pred_check_branch
          %798 = sbr.rel (%p796) target = $region56
        $region55: #{tpu_custom_call.1} parent=31 // pred_region
          %s800 = ssub.s32 1024, 1024
          %801 = vsyncadd %s792, %s800
          %s802 = smul.addr %s25, 8
          %s803 = smul.addr %s802, 128
          %s804 = scalar_lea.hbm %s3, %s803
          %s805 = sshll.u32 %s795, 4
          %s806 = int_to_ptr.vmem [resolvable:$true] %s805
          %811 = dma.vmem_to_hbm [thread:$0]  %s806, 1024, %s804, %s792, 128, 128, 8
        $region56: #{tpu_custom_call.1} parent=31 // pred_fallthru
          _
      $region32: #{tpu_custom_call.1} parent=5 // pred_fallthru
        _
      %p812 = scmp.le.s32.totalorder 2, %s16
      // Predicated region
      $region57: #{tpu_custom_call.1} parent=5 // pred_check
        %p813 = pneg %p812
      $region58: #{tpu_custom_call.1} parent=5 // pred_check_branch
        %815 = sbr.rel (%p813) target = $region60
      $region59: #{tpu_custom_call.1} parent=5 // pred_region
        %s816 = ssub.s32 %s16, 2
        // Predicated region
        $region61: #{tpu_custom_call.1} parent=59 // pred_check
          %p817 = pneg %p127
        $region62: #{tpu_custom_call.1} parent=59 // pred_check_branch
          %819 = sbr.rel (%p817) target = $region64
        $region63: #{tpu_custom_call.1} parent=59 // pred_region
          %s820 = sand.u32 %s112, 1
          %s821 = scalar_lea.sflag [#allocation6], %s820
          %s822 = sand.u32 %s112, 1
          %s823 = smul.addr %s822, 64
          %s824 = scalar_lea.vmem [#allocation10], %s823
          %825 = dma.done %s821, 1024
        $region64: #{tpu_custom_call.1} parent=59 // pred_fallthru
          _
      $region60: #{tpu_custom_call.1} parent=5 // pred_fallthru
        _
    $region6: #{tpu_custom_call.1} parent=1 // loop_footer
      %s20 = sadd.s32 1, %s16
    $region7: #{tpu_custom_call.1} parent=1 // loop_footer_branch
      %15 = sbr.rel target = $region3
    $region8: #{tpu_custom_call.1} parent=1 // loop_exit
      _
    %826 = vsyncpa [#allocation5], 1
    %s827 = scalar_lea.sflag [#allocation5], 1
    %828 = vsyncpa %s827, 1
    %829 = vsyncpa [#allocation8], 1
    %830 = vsyncpa [#allocation6], 1
    %s831 = scalar_lea.sflag [#allocation6], 1
    %832 = vsyncpa %s831, 1

</llo_original>
